<compile_context>
chip_gen: v7x
topology: tpu7x:2x2x1
jax: 0.10.0
libtpu: 0.0.40
codegen_flags: <defaults>
</compile_context>

<pallas_src>
import functools

import jax
import jax.numpy as jnp
from jax import lax
from jax.experimental import pallas as pl
from jax.experimental.pallas import tpu as pltpu


def _round_up(x: int, m: int) -> int:
    return ((x + m - 1) // m) * m


def _cdiv(a: int, b: int) -> int:
    return -(-a // b)


def _mlp_kernel(x_ref, w1_ref, b1_ref, w2_ref, b2_ref, o_ref, *, eps: float):
    # ---- Linear 1: (tb, D_in) @ (D_in, H) + b1  (bf16 operands, f32 accumulate) ----
    x = x_ref[...]
    if x.dtype != jnp.bfloat16:           # no-op when the producer already emits bf16
        x = x.astype(jnp.bfloat16)
    h = jnp.dot(x, w1_ref[...], preferred_element_type=jnp.float32)
    h = h + b1_ref[...]                   # b1 is (1, H), broadcasts over rows

    # ---- ReLU ----
    h = jnp.maximum(h, 0.0)

    # ---- LayerNorm over hidden dim (f32, single-pass variance, clamped) ----
    mean = jnp.mean(h, axis=-1, keepdims=True)
    mean_sq = jnp.mean(h * h, axis=-1, keepdims=True)
    var = jnp.maximum(mean_sq - mean * mean, 0.0)
    hn = (h - mean) * lax.rsqrt(var + eps)
    # gamma/beta were folded into w2/b2 in the wrapper.

    # ---- Linear 2: (tb, H) @ (H, D_out) + b2 ----
    out = jnp.dot(hn.astype(jnp.bfloat16), w2_ref[...],
                  preferred_element_type=jnp.float32)
    o_ref[...] = (out + b2_ref[...]).astype(o_ref.dtype)


def mlp_forward(x, w1, b1, gamma, beta, w2, b2, *, eps=1e-5, block_rows=512):
    """x: [B, input_dim] (bf16 preferred, f32 accepted) -> [B, output_dim] float32."""
    B, d_in = x.shape
    hidden = w1.shape[1]
    d_out = w2.shape[1]
    SUBLANE = 8

    # --- Fold LayerNorm affine into the second linear (once, on the host) ---
    w2_eff = gamma[:, None].astype(jnp.float32) * w2.astype(jnp.float32)        # (H, d_out)
    b2_eff = beta.astype(jnp.float32) @ w2.astype(jnp.float32) + b2.astype(jnp.float32)

    # --- bf16 weights for the MXU; biases stay f32 ---
    w1_bf = w1.astype(jnp.bfloat16)
    w2_bf = w2_eff.astype(jnp.bfloat16)
    b1_2d = b1.reshape(1, hidden).astype(jnp.float32)
    b2_2d = b2_eff.reshape(1, d_out)

    # --- Row tiling: no wrapper-side pad/copy; ragged last tile is masked by Pallas.
    #     Aim for >= 2 tiles (both v7x TCs) and an even tile count when possible. ---
    n_tiles = max(1, _cdiv(B, block_rows))
    if B > SUBLANE:
        n_tiles = max(2, n_tiles)
        if n_tiles % 2:
            n_tiles += 1
    tb = _round_up(_cdiv(B, n_tiles), SUBLANE)
    grid_len = _cdiv(B, tb)

    kernel = functools.partial(_mlp_kernel, eps=eps)

    out = pl.pallas_call(
        kernel,
        out_shape=jax.ShapeDtypeStruct((B, d_out), jnp.float32),
        grid_spec=pltpu.PrefetchScalarGridSpec(
            num_scalar_prefetch=0,
            grid=(grid_len,),
            in_specs=[
                pl.BlockSpec((tb, d_in), lambda i: (i, 0)),        # x row tile (ragged last OK)
                pl.BlockSpec((d_in, hidden), lambda i: (0, 0)),    # w1 (full, resident)
                pl.BlockSpec((1, hidden), lambda i: (0, 0)),       # b1
                pl.BlockSpec((hidden, d_out), lambda i: (0, 0)),   # w2 (LN-affine folded)
                pl.BlockSpec((1, d_out), lambda i: (0, 0)),        # b2 (LN-affine folded)
            ],
            out_specs=pl.BlockSpec((tb, d_out), lambda i: (i, 0)), # d_out == full dim -> legal
        ),
        compiler_params=pltpu.CompilerParams(
            dimension_semantics=("parallel",),   # batch tiles shard across TCs (v7x)
            vmem_limit_bytes=32 * 1024 * 1024,
        ),
    )(x, w1_bf, b1_2d, w2_bf, b2_2d)
    return out


def _reference(x, w1, b1, gamma, beta, w2, b2, eps=1e-5):
    h = x @ w1 + b1
    h = jnp.maximum(h, 0.0)
    mean = jnp.mean(h, axis=-1, keepdims=True)
    var = jnp.mean((h - mean) ** 2, axis=-1, keepdims=True)
    hn = (h - mean) * lax.rsqrt(var + eps)
    hn = hn * gamma + beta
    return hn @ w2 + b2


if __name__ == "__main__":
    input_dim, hidden_dim, output_dim = 768, 256, 64
    batch = 200   # not a multiple of the row tile -> exercises the ragged last block

    key = jax.random.PRNGKey(0)
    kx, kw1, kb1, kg, kbe, kw2, kb2 = jax.random.split(key, 7)

    bound1 = 1.0 / (input_dim ** 0.5)
    bound2 = 1.0 / (hidden_dim ** 0.5)
    x_f32 = jax.random.normal(kx, (batch, input_dim), dtype=jnp.float32)
    w1 = jax.random.uniform(kw1, (input_dim, hidden_dim), jnp.float32, -bound1, bound1)
    b1 = jax.random.uniform(kb1, (hidden_dim,), jnp.float32, -bound1, bound1)
    # Non-trivial LN affine to exercise the gamma/beta fold.
    gamma = 1.0 + 0.1 * jax.random.normal(kg, (hidden_dim,), dtype=jnp.float32)
    beta = 0.1 * jax.random.normal(kbe, (hidden_dim,), dtype=jnp.float32)
    w2 = jax.random.uniform(kw2, (hidden_dim, output_dim), jnp.float32, -bound2, bound2)
    b2 = jax.random.uniform(kb2, (output_dim,), jnp.float32, -bound2, bound2)

    # Producer emits bf16 (halves the dominant HBM read stream); the wrapper never
    # re-casts x. Reference uses the same bf16-rounded input so the comparison only
    # measures kernel error, not input rounding.
    x_bf16 = x_f32.astype(jnp.bfloat16)

    out = mlp_forward(x_bf16, w1, b1, gamma, beta, w2, b2)
    out = jax.block_until_ready(out)

    ref = _reference(x_bf16.astype(jnp.float32), w1, b1, gamma, beta, w2, b2)
    assert out.shape == (batch, output_dim)
    # bf16 matmul operands (f32 accumulation) vs. an all-f32 reference.
    assert jnp.allclose(out, ref, atol=3e-2, rtol=3e-2), "mismatch vs reference"

    print("KERNEL_OK")
</pallas_src>

<mosaic_0001>
module attributes {stable_mosaic.version = 11 : i64} {
  func.func @_mlp_kernel(%arg0: i32, %arg1: memref<104x768xbf16, #tpu.memory_space<vmem>>, %arg2: memref<768x256xbf16, #tpu.memory_space<vmem>>, %arg3: memref<1x256xf32, #tpu.memory_space<vmem>>, %arg4: memref<256x64xbf16, #tpu.memory_space<vmem>>, %arg5: memref<1x64xf32, #tpu.memory_space<vmem>>, %arg6: memref<104x64xf32, #tpu.memory_space<vmem>>) attributes {dimension_semantics = [#tpu.dimension_semantics<parallel>], iteration_bounds = array<i64: 2>, scalar_prefetch = 0 : i64, scratch_operands = 0 : i64, tpu.core_type = #tpu.core_type<tc>, window_params = [{transform_indices = @transform_0, window_bounds = array<i64: 104, 768>}, {pipeline_mode = #tpu.pipeline_mode<synchronous>, transform_indices = @transform_1, window_bounds = array<i64: 768, 256>}, {pipeline_mode = #tpu.pipeline_mode<synchronous>, transform_indices = @transform_2, window_bounds = array<i64: 1, 256>}, {pipeline_mode = #tpu.pipeline_mode<synchronous>, transform_indices = @transform_3, window_bounds = array<i64: 256, 64>}, {pipeline_mode = #tpu.pipeline_mode<synchronous>, transform_indices = @transform_4, window_bounds = array<i64: 1, 64>}, {transform_indices = @transform_5, window_bounds = array<i64: 104, 64>}]} {
    %c0 = arith.constant 0 : index
    %c0_0 = arith.constant 0 : index
    %0 = vector.load %arg1[%c0, %c0_0] : memref<104x768xbf16, #tpu.memory_space<vmem>>, vector<104x768xbf16>
    %c0_1 = arith.constant 0 : index
    %c0_2 = arith.constant 0 : index
    %1 = vector.load %arg2[%c0_1, %c0_2] : memref<768x256xbf16, #tpu.memory_space<vmem>>, vector<768x256xbf16>
    %cst = arith.constant dense<0.000000e+00> : vector<104x256xf32>
    %2 = tpu.matmul %0, %1, %cst {dimension_numbers = #tpu.dot_dimension_numbers<[1], [0], [0], [1], [0, 0, 1, 1], [], []>} : vector<104x768xbf16>, vector<768x256xbf16>, vector<104x256xf32> -> vector<104x256xf32>
    %c0_3 = arith.constant 0 : index
    %c0_4 = arith.constant 0 : index
    %3 = vector.load %arg3[%c0_3, %c0_4] : memref<1x256xf32, #tpu.memory_space<vmem>>, vector<1x256xf32>
    %4 = vector.broadcast %3 : vector<1x256xf32> to vector<104x256xf32>
    %5 = arith.addf %2, %4 : vector<104x256xf32>
    %cst_5 = arith.constant 0.000000e+00 : f32
    %6 = vector.broadcast %cst_5 : f32 to vector<104x256xf32>
    %7 = arith.maximumf %5, %6 : vector<104x256xf32>
    %cst_6 = arith.constant dense<0.000000e+00> : vector<104xf32>
    %8 = vector.multi_reduction <add>, %7, %cst_6 [1] : vector<104x256xf32> to vector<104xf32>
    %9 = vector.shape_cast %8 : vector<104xf32> to vector<104x1xf32>
    %cst_7 = arith.constant 2.560000e+02 : f32
    %10 = vector.broadcast %cst_7 : f32 to vector<104x1xf32>
    %11 = arith.divf %9, %10 : vector<104x1xf32>
    %12 = arith.mulf %7, %7 : vector<104x256xf32>
    %cst_8 = arith.constant dense<0.000000e+00> : vector<104xf32>
    %13 = vector.multi_reduction <add>, %12, %cst_8 [1] : vector<104x256xf32> to vector<104xf32>
    %14 = vector.shape_cast %13 : vector<104xf32> to vector<104x1xf32>
    %cst_9 = arith.constant 2.560000e+02 : f32
    %15 = vector.broadcast %cst_9 : f32 to vector<104x1xf32>
    %16 = arith.divf %14, %15 : vector<104x1xf32>
    %17 = arith.mulf %11, %11 : vector<104x1xf32>
    %18 = arith.subf %16, %17 : vector<104x1xf32>
    %cst_10 = arith.constant 0.000000e+00 : f32
    %19 = vector.broadcast %cst_10 : f32 to vector<104x1xf32>
    %20 = arith.maximumf %18, %19 : vector<104x1xf32>
    %21 = vector.broadcast %11 : vector<104x1xf32> to vector<104x256xf32>
    %22 = arith.subf %7, %21 : vector<104x256xf32>
    %cst_11 = arith.constant 9.99999974E-6 : f32
    %23 = vector.broadcast %cst_11 : f32 to vector<104x1xf32>
    %24 = arith.addf %20, %23 : vector<104x1xf32>
    %25 = math.rsqrt %24 : vector<104x1xf32>
    %26 = vector.broadcast %25 : vector<104x1xf32> to vector<104x256xf32>
    %27 = arith.mulf %22, %26 : vector<104x256xf32>
    %28 = arith.truncf %27 : vector<104x256xf32> to vector<104x256xbf16>
    %c0_12 = arith.constant 0 : index
    %c0_13 = arith.constant 0 : index
    %29 = vector.load %arg4[%c0_12, %c0_13] : memref<256x64xbf16, #tpu.memory_space<vmem>>, vector<256x64xbf16>
    %cst_14 = arith.constant dense<0.000000e+00> : vector<104x64xf32>
    %30 = tpu.matmul %28, %29, %cst_14 {dimension_numbers = #tpu.dot_dimension_numbers<[1], [0], [0], [1], [0, 0, 1, 1], [], []>} : vector<104x256xbf16>, vector<256x64xbf16>, vector<104x64xf32> -> vector<104x64xf32>
    %c0_15 = arith.constant 0 : index
    %c0_16 = arith.constant 0 : index
    %31 = vector.load %arg5[%c0_15, %c0_16] : memref<1x64xf32, #tpu.memory_space<vmem>>, vector<1x64xf32>
    %32 = vector.broadcast %31 : vector<1x64xf32> to vector<104x64xf32>
    %33 = arith.addf %30, %32 : vector<104x64xf32>
    %c0_17 = arith.constant 0 : index
    %c0_18 = arith.constant 0 : index
    %34 = vector.load %arg6[%c0_17, %c0_18] : memref<104x64xf32, #tpu.memory_space<vmem>>, vector<104x64xf32>
    tpu.vector_store %arg6[%c0_17, %c0_18], %33 {strides = array<i32>} : memref<104x64xf32, #tpu.memory_space<vmem>>, vector<104x64xf32>,
    return
  }
  func.func @transform_0(%arg0: i32) -> (i32, i32) {
    %c0_i32 = arith.constant 0 : i32
    %c0_i32_0 = arith.constant 0 : i32
    return %arg0, %c0_i32 : i32, i32
  }
  func.func @transform_1(%arg0: i32) -> (i32, i32) {
    %c0_i32 = arith.constant 0 : i32
    %c0_i32_0 = arith.constant 0 : i32
    %c0_i32_1 = arith.constant 0 : i32
    return %c0_i32, %c0_i32_0 : i32, i32
  }
  func.func @transform_2(%arg0: i32) -> (i32, i32) {
    %c0_i32 = arith.constant 0 : i32
    %c0_i32_0 = arith.constant 0 : i32
    %c0_i32_1 = arith.constant 0 : i32
    return %c0_i32, %c0_i32_0 : i32, i32
  }
  func.func @transform_3(%arg0: i32) -> (i32, i32) {
    %c0_i32 = arith.constant 0 : i32
    %c0_i32_0 = arith.constant 0 : i32
    %c0_i32_1 = arith.constant 0 : i32
    return %c0_i32, %c0_i32_0 : i32, i32
  }
  func.func @transform_4(%arg0: i32) -> (i32, i32) {
    %c0_i32 = arith.constant 0 : i32
    %c0_i32_0 = arith.constant 0 : i32
    %c0_i32_1 = arith.constant 0 : i32
    return %c0_i32, %c0_i32_0 : i32, i32
  }
  func.func @transform_5(%arg0: i32) -> (i32, i32) {
    %c0_i32 = arith.constant 0 : i32
    %c0_i32_0 = arith.constant 0 : i32
    return %arg0, %c0_i32 : i32, i32
  }
}

</mosaic_0001>

<llo_original>
// kernel: tpu_custom_call.1
$region0: #{tpu_custom_call.1}
  #allocation0 [shape = 'u32[]', space=smem, size = 0x4, offset = 0x4, fixed_abs, tag = 'smem constant byte address 0x4 - core index']
  #allocation1 [shape = 'u32[144,128]{1,0:T(1,128)}', space=vmem, size = 0x12000, scoped, tag = 'internal scratch']
  %s0 = inlined_call_operand.hbm [shape: bf16[200,768], index: 0, kind: input, shape index: {}]
  %s1 = inlined_call_operand.hbm [shape: bf16[768,256], index: 1, kind: input, shape index: {}]
  %s2 = inlined_call_operand.vmem [shape: f32[1,256], index: 2, kind: input, shape index: {}]
  %s3 = inlined_call_operand.vmem [shape: bf16[256,64], index: 3, kind: input, shape index: {}]
  %s4 = inlined_call_operand.vmem [shape: f32[1,64], index: 4, kind: input, shape index: {}]
  %s5 = inlined_call_operand.vmem [shape: f32[200,64], index: 5, kind: output, shape index: {}]
  %s6 = sld [smem:[#allocation0]]
  $region109: #{tpu_custom_call.1} parent=0
    _
  %s8 = ssub.s32 1, %s6
  %s9 = scalar_select 0, %s8, %s6
  $region1: #{tpu_custom_call.1} parent=0
    #allocation2 [shape = 'u8[319488]{0}', space=vmem, size = 0x4e000, scoped, tag = 'input window, operand 0']
    #allocation3 [shape = 's32[2]{0}', space=sflag, size = 0x8, scoped, tag = 'scoped memory for tpu_custom_call.1']
    #allocation4 [shape = 'u8[393216]{0}', space=vmem, size = 0x60000, scoped, tag = 'input window, operand 1, single buffered']
    #allocation5 [shape = 's32[1]{0}', space=sflag, size = 0x4, scoped, tag = 'scoped memory for tpu_custom_call.1']
    #allocation6 [shape = 'u8[106496]{0}', space=vmem, size = 0x1a000, scoped, tag = 'output window, operand 0']
    %10 = vsyncpa [#allocation3], 0
    %s11 = scalar_lea.sflag [#allocation3], 1
    %12 = vsyncpa %s11, 0
    %13 = vsyncpa [#allocation5], 0
    loop: start=0, step=1, limit=4
    $region2: #{tpu_custom_call.1} parent=1 // loop_pre_header
      _
    $region3: #{tpu_custom_call.1} parent=1 // loop_header
      %s15 = sphi 0, %s19
      %p16 = scmp.ge.s32.totalorder %s15, 4
      %s25 = sphi 0, %s27
      %s28 = sphi 0, %s25
      %s29 = sphi 0, %s28
      %s45 = sphi 0, %s29
      %s49 = sphi 0, %s49
      %s51 = sphi 0, %s49
      %s52 = sphi 0, %s51
      %s66 = sphi 0, %s52
      %s70 = sphi 0, %s70
      %s72 = sphi 0, %s70
      %s73 = sphi 0, %s72
      %s87 = sphi 0, %s73
      %s91 = sphi 0, %s91
      %s93 = sphi 0, %s91
      %s94 = sphi 0, %s93
      %s108 = sphi 0, %s94
      %s112 = sphi 0, %s112
      %s114 = sphi 0, %s112
      %s115 = sphi 0, %s114
      %s129 = sphi 0, %s115
      %s135 = sphi 0, %s137
      %s138 = sphi 0, %s135
      %s139 = sphi 0, %s138
      %s155 = sphi 0, %s139
    $region4: #{tpu_custom_call.1} parent=1 // loop_header_branch
      %18 = sbr.rel (%p16) target = $region8
    $region5: #{tpu_custom_call.1} parent=1 // loop_body
      %s20 = ssub.s32 %s15, 1
      %s21 = ssub.s32 %s15, 2
      %s22 = sadd.s32 %s15, 1
      %s23 = ssub.s32 %s15, %s22
      %p24 = scmp.eq.s32.totalorder %s23, 0
      %s26 = sadd.s32 %s25, 1
      %s27 = scalar_select %p24, %s25, %s26
      %p30 = pneg %p24
      %p31 = scmp.eq.s32.totalorder %s15, 1
      %p32 = por %p30, %p31
      %p33 = scmp.ne.s32.totalorder %s25, %s28
      %p34 = scmp.eq.s32.totalorder %s15, 0
      %p35 = por %p33, %p34
      %p36 = scmp.ne.s32.totalorder %s25, %s28
      %p37 = scmp.eq.s32.totalorder %s20, 1
      %p38 = por %p36, %p37
      %p39 = scmp.ne.s32.totalorder %s28, %s29
      %p40 = scmp.eq.s32.totalorder %s20, 0
      %p41 = por %p39, %p40
      %p42 = scmp.ne.s32.totalorder %s28, %s29
      %p43 = scmp.eq.s32.totalorder %s21, 1
      %p44 = por %p42, %p43
      %p46 = scmp.ne.s32.totalorder %s29, %s45
      %p47 = scmp.eq.s32.totalorder %s21, 0
      %p48 = por %p46, %p47
      %s50 = sadd.s32 %s49, 1
      %p53 = scmp.eq.s32.totalorder %s15, 1
      %p54 = scmp.ne.s32.totalorder %s49, %s51
      %p55 = scmp.eq.s32.totalorder %s15, 0
      %p56 = por %p54, %p55
      %p57 = scmp.ne.s32.totalorder %s49, %s51
      %p58 = scmp.eq.s32.totalorder %s20, 1
      %p59 = por %p57, %p58
      %p60 = scmp.ne.s32.totalorder %s51, %s52
      %p61 = scmp.eq.s32.totalorder %s20, 0
      %p62 = por %p60, %p61
      %p63 = scmp.ne.s32.totalorder %s51, %s52
      %p64 = scmp.eq.s32.totalorder %s21, 1
      %p65 = por %p63, %p64
      %p67 = scmp.ne.s32.totalorder %s52, %s66
      %p68 = scmp.eq.s32.totalorder %s21, 0
      %p69 = por %p67, %p68
      %s71 = sadd.s32 %s70, 1
      %p74 = scmp.eq.s32.totalorder %s15, 1
      %p75 = scmp.ne.s32.totalorder %s70, %s72
      %p76 = scmp.eq.s32.totalorder %s15, 0
      %p77 = por %p75, %p76
      %p78 = scmp.ne.s32.totalorder %s70, %s72
      %p79 = scmp.eq.s32.totalorder %s20, 1
      %p80 = por %p78, %p79
      %p81 = scmp.ne.s32.totalorder %s72, %s73
      %p82 = scmp.eq.s32.totalorder %s20, 0
      %p83 = por %p81, %p82
      %p84 = scmp.ne.s32.totalorder %s72, %s73
      %p85 = scmp.eq.s32.totalorder %s21, 1
      %p86 = por %p84, %p85
      %p88 = scmp.ne.s32.totalorder %s73, %s87
      %p89 = scmp.eq.s32.totalorder %s21, 0
      %p90 = por %p88, %p89
      %s92 = sadd.s32 %s91, 1
      %p95 = scmp.eq.s32.totalorder %s15, 1
      %p96 = scmp.ne.s32.totalorder %s91, %s93
      %p97 = scmp.eq.s32.totalorder %s15, 0
      %p98 = por %p96, %p97
      %p99 = scmp.ne.s32.totalorder %s91, %s93
      %p100 = scmp.eq.s32.totalorder %s20, 1
      %p101 = por %p99, %p100
      %p102 = scmp.ne.s32.totalorder %s93, %s94
      %p103 = scmp.eq.s32.totalorder %s20, 0
      %p104 = por %p102, %p103
      %p105 = scmp.ne.s32.totalorder %s93, %s94
      %p106 = scmp.eq.s32.totalorder %s21, 1
      %p107 = por %p105, %p106
      %p109 = scmp.ne.s32.totalorder %s94, %s108
      %p110 = scmp.eq.s32.totalorder %s21, 0
      %p111 = por %p109, %p110
      %s113 = sadd.s32 %s112, 1
      %p116 = scmp.eq.s32.totalorder %s15, 1
      %p117 = scmp.ne.s32.totalorder %s112, %s114
      %p118 = scmp.eq.s32.totalorder %s15, 0
      %p119 = por %p117, %p118
      %p120 = scmp.ne.s32.totalorder %s112, %s114
      %p121 = scmp.eq.s32.totalorder %s20, 1
      %p122 = por %p120, %p121
      %p123 = scmp.ne.s32.totalorder %s114, %s115
      %p124 = scmp.eq.s32.totalorder %s20, 0
      %p125 = por %p123, %p124
      %p126 = scmp.ne.s32.totalorder %s114, %s115
      %p127 = scmp.eq.s32.totalorder %s21, 1
      %p128 = por %p126, %p127
      %p130 = scmp.ne.s32.totalorder %s115, %s129
      %p131 = scmp.eq.s32.totalorder %s21, 0
      %p132 = por %p130, %p131
      %s133 = ssub.s32 %s15, %s22
      %p134 = scmp.eq.s32.totalorder %s133, 0
      %s136 = sadd.s32 %s135, 1
      %s137 = scalar_select %p134, %s135, %s136
      %p140 = pneg %p134
      %p141 = scmp.eq.s32.totalorder %s15, 1
      %p142 = por %p140, %p141
      %p143 = scmp.ne.s32.totalorder %s135, %s138
      %p144 = scmp.eq.s32.totalorder %s15, 0
      %p145 = por %p143, %p144
      %p146 = scmp.ne.s32.totalorder %s135, %s138
      %p147 = scmp.eq.s32.totalorder %s20, 1
      %p148 = por %p146, %p147
      %p149 = scmp.ne.s32.totalorder %s138, %s139
      %p150 = scmp.eq.s32.totalorder %s20, 0
      %p151 = por %p149, %p150
      %p152 = scmp.ne.s32.totalorder %s138, %s139
      %p153 = scmp.eq.s32.totalorder %s21, 1
      %p154 = por %p152, %p153
      %p156 = scmp.ne.s32.totalorder %s139, %s155
      %p157 = scmp.eq.s32.totalorder %s21, 0
      %p158 = por %p156, %p157
      %p159 = scmp.le.s32.totalorder 1, %s15
      %p160 = scmp.lt.s32.totalorder %s15, 3
      %p161 = pnand %p159, %p160
      %p162 = pneg %p161
      // Predicated region
      $region9: #{tpu_custom_call.1} parent=5 // pred_check
        _
      $region10: #{tpu_custom_call.1} parent=5 // pred_check_branch
        %164 = sbr.rel (%p161) target = $region12
      $region11: #{tpu_custom_call.1} parent=5 // pred_region
        %s165 = ssub.s32 %s15, 1
        // Predicated region
        $region13: #{tpu_custom_call.1} parent=11 // pred_check
          %p166 = pneg %p62
        $region14: #{tpu_custom_call.1} parent=11 // pred_check_branch
          %168 = sbr.rel (%p166) target = $region16
        $region15: #{tpu_custom_call.1} parent=11 // pred_region
          %s170 = ssub.s32 12288, 12288
          %171 = vsyncadd [#allocation5], %s170
          %s172 = sshll.u32 [#allocation4], 4
          %s173 = int_to_ptr.vmem [resolvable:$true] %s172
          %178 = dma.hbm_to_vmem [thread:$0]  %s1, 12288, %s173, [#allocation5], 128, 128, 8
        $region16: #{tpu_custom_call.1} parent=11 // pred_fallthru
          _
        // Predicated region
        $region17: #{tpu_custom_call.1} parent=11 // pred_check
          %p179 = pneg %p83
        $region18: #{tpu_custom_call.1} parent=11 // pred_check_branch
          %181 = sbr.rel (%p179) target = $region20
        $region19: #{tpu_custom_call.1} parent=11 // pred_region
          _
        $region20: #{tpu_custom_call.1} parent=11 // pred_fallthru
          _
        // Predicated region
        $region21: #{tpu_custom_call.1} parent=11 // pred_check
          %p182 = pneg %p104
        $region22: #{tpu_custom_call.1} parent=11 // pred_check_branch
          %184 = sbr.rel (%p182) target = $region24
        $region23: #{tpu_custom_call.1} parent=11 // pred_region
          _
        $region24: #{tpu_custom_call.1} parent=11 // pred_fallthru
          _
        // Predicated region
        $region25: #{tpu_custom_call.1} parent=11 // pred_check
          %p185 = pneg %p125
        $region26: #{tpu_custom_call.1} parent=11 // pred_check_branch
          %187 = sbr.rel (%p185) target = $region28
        $region27: #{tpu_custom_call.1} parent=11 // pred_region
          _
        $region28: #{tpu_custom_call.1} parent=11 // pred_fallthru
          _
      $region12: #{tpu_custom_call.1} parent=5 // pred_fallthru
        _
      %p188 = scmp.lt.s32.totalorder %s15, 2
      // Predicated region
      $region29: #{tpu_custom_call.1} parent=5 // pred_check
        %p189 = pneg %p188
      $region30: #{tpu_custom_call.1} parent=5 // pred_check_branch
        %191 = sbr.rel (%p189) target = $region32
      $region31: #{tpu_custom_call.1} parent=5 // pred_region
        // Predicated region
        $region33: #{tpu_custom_call.1} parent=31 // pred_check
          %p192 = pneg %p35
        $region34: #{tpu_custom_call.1} parent=31 // pred_check_branch
          %194 = sbr.rel (%p192) target = $region36
        $region35: #{tpu_custom_call.1} parent=31 // pred_region
          %s195 = sand.u32 %s25, 1
          %s196 = scalar_lea.sflag [#allocation3], %s195
          %s197 = sand.u32 %s25, 1
          %s198 = smul.addr %s197, 312
          %s199 = scalar_lea.vmem [#allocation2], %s198
          %s200 = smul.u32 13, %s15
          %s201 = ssub.s32 25, %s200
          %p202 = scmp.lt.s32.totalorder %s201, 13
          %s203 = scalar_select %p202, %s201, 13
          %s204 = smul.u32 64, %s203
          %s205 = smul.u32 %s204, 6
          %s207 = ssub.s32 4992, %s205
          %208 = vsyncadd %s196, %s207
          %p209 = scmp.ne.s32.totalorder 0, %s205
          %s210 = smul.addr %s200, 6
          %s211 = smul.addr %s210, 64
          %s212 = scalar_lea.hbm %s0, %s211
          %s213 = smul.u32 24, %s203
          %s214 = sshll.u32 %s199, 4
          %s215 = int_to_ptr.vmem [resolvable:$true] %s214
          %s216 = sshll.u32 %s213, 4
          %220 = dma.hbm_to_vmem [thread:$0]  (%p209), %s212, %s216, %s215, %s196, 384, 384, 24
        $region36: #{tpu_custom_call.1} parent=31 // pred_fallthru
          _
      $region32: #{tpu_custom_call.1} parent=5 // pred_fallthru
        _
      %p221 = scmp.le.s32.totalorder 1, %s15
      %p222 = scmp.lt.s32.totalorder %s15, 3
      %p223 = pnand %p221, %p222
      %p224 = pneg %p223
      // Predicated region
      $region37: #{tpu_custom_call.1} parent=5 // pred_check
        _
      $region38: #{tpu_custom_call.1} parent=5 // pred_check_branch
        %226 = sbr.rel (%p223) target = $region40
      $region39: #{tpu_custom_call.1} parent=5 // pred_region
        %s227 = ssub.s32 %s15, 1
        %s228 = sand.u32 %s28, 1
        %s229 = scalar_lea.sflag [#allocation3], %s228
        %s230 = sand.u32 %s28, 1
        %s231 = smul.addr %s230, 312
        %s232 = scalar_lea.vmem [#allocation2], %s231
        // Predicated region
        $region41: #{tpu_custom_call.1} parent=39 // pred_check
          %p233 = pneg %p41
        $region42: #{tpu_custom_call.1} parent=39 // pred_check_branch
          %235 = sbr.rel (%p233) target = $region44
        $region43: #{tpu_custom_call.1} parent=39 // pred_region
          %236 = dma.done %s229, 4992
        $region44: #{tpu_custom_call.1} parent=39 // pred_fallthru
          _
        // Predicated region
        $region45: #{tpu_custom_call.1} parent=39 // pred_check
          %p237 = pneg %p62
        $region46: #{tpu_custom_call.1} parent=39 // pred_check_branch
          %239 = sbr.rel (%p237) target = $region48
        $region47: #{tpu_custom_call.1} parent=39 // pred_region
          %240 = dma.done [#allocation5], 12288
        $region48: #{tpu_custom_call.1} parent=39 // pred_fallthru
          _
        %s241 = sand.u32 %s28, 1
        %s242 = scalar_lea.sflag [#allocation3], %s241
        %s243 = sand.u32 %s28, 1
        %s244 = smul.addr %s243, 312
        %s245 = scalar_lea.vmem [#allocation2], %s244
        %p246 = pneg %p41
        %p247 = pneg %p38
        %p248 = pneg %p62
        %p249 = pneg %p59
        %p250 = pneg %p83
        %p251 = pneg %p80
        %p252 = pneg %p104
        %p253 = pneg %p101
        %p254 = pneg %p125
        %p255 = pneg %p122
        %p256 = pneg %p151
        %p257 = pneg %p148
        %s258 = sand.u32 %s138, 1
        %s259 = sand.u32 %s138, 1
        %s260 = smul.addr %s259, 104
        %s261 = scalar_lea.vmem [#allocation6], %s260
        %s262 = smul.u32 13, %s20
        %s263 = ssub.s32 25, %s262
        %p264 = scmp.lt.s32.totalorder %s263, 13
        %s265 = scalar_select %p264, %s263, 13
        %s266 = smul.u32 64, %s265
        %s267 = smul.u32 %s266, 6
        %s268 = smul.u32 13, %s20
        %s269 = ssub.s32 25, %s268
        %p270 = scmp.lt.s32.totalorder %s269, 13
        %s271 = scalar_select %p270, %s269, 13
        %s272 = smul.u32 128, %s271
        %v274 = vld [vmem:[%s232] sm:$0xff]
        %v275 = vld [vmem:[%s232 + $0x8] sm:$0xff]
        %v276 = vld [vmem:[%s232 + $0x10] sm:$0xff]
        %v277 = vld [vmem:[%s232 + $0x18] sm:$0xff]
        %v278 = vld [vmem:[%s232 + $0x20] sm:$0xff]
        %v279 = vld [vmem:[%s232 + $0x28] sm:$0xff]
        %v280 = vld [vmem:[%s232 + $0x30] sm:$0xff]
        %v281 = vld [vmem:[%s232 + $0x38] sm:$0xff]
        %v282 = vld [vmem:[%s232 + $0x40] sm:$0xff]
        %v283 = vld [vmem:[%s232 + $0x48] sm:$0xff]
        %v284 = vld [vmem:[%s232 + $0x50] sm:$0xff]
        %v285 = vld [vmem:[%s232 + $0x58] sm:$0xff]
        %v286 = vld [vmem:[%s232 + $0x60] sm:$0xff]
        %v287 = vld [vmem:[%s232 + $0x68] sm:$0xff]
        %v288 = vld [vmem:[%s232 + $0x70] sm:$0xff]
        %v289 = vld [vmem:[%s232 + $0x78] sm:$0xff]
        %v290 = vld [vmem:[%s232 + $0x80] sm:$0xff]
        %v291 = vld [vmem:[%s232 + $0x88] sm:$0xff]
        %v292 = vld [vmem:[%s232 + $0x90] sm:$0xff]
        %v293 = vld [vmem:[%s232 + $0x98] sm:$0xff]
        %v294 = vld [vmem:[%s232 + $0xa0] sm:$0xff]
        %v295 = vld [vmem:[%s232 + $0xa8] sm:$0xff]
        %v296 = vld [vmem:[%s232 + $0xb0] sm:$0xff]
        %v297 = vld [vmem:[%s232 + $0xb8] sm:$0xff]
        %v298 = vld [vmem:[%s232 + $0xc0] sm:$0xff]
        %v299 = vld [vmem:[%s232 + $0xc8] sm:$0xff]
        %v300 = vld [vmem:[%s232 + $0xd0] sm:$0xff]
        %v301 = vld [vmem:[%s232 + $0xd8] sm:$0xff]
        %v302 = vld [vmem:[%s232 + $0xe0] sm:$0xff]
        %v303 = vld [vmem:[%s232 + $0xe8] sm:$0xff]
        %v304 = vld [vmem:[%s232 + $0xf0] sm:$0xff]
        %v305 = vld [vmem:[%s232 + $0xf8] sm:$0xff]
        %v306 = vld [vmem:[%s232 + $0x100] sm:$0xff]
        %v307 = vld [vmem:[%s232 + $0x108] sm:$0xff]
        %v308 = vld [vmem:[%s232 + $0x110] sm:$0xff]
        %v309 = vld [vmem:[%s232 + $0x118] sm:$0xff]
        %v310 = vld [vmem:[%s232 + $0x120] sm:$0xff]
        %v311 = vld [vmem:[%s232 + $0x128] sm:$0xff]
        %v312 = vld [vmem:[%s232 + $0x130] sm:$0xff]
        %v313 = vld [vmem:[#allocation4] sm:$0xff]
        %v314 = vld [vmem:[#allocation4 + $0x8] sm:$0xff]
        %v315 = vld [vmem:[#allocation4 + $0x10] sm:$0xff]
        %v316 = vld [vmem:[#allocation4 + $0x18] sm:$0xff]
        %v317 = vld [vmem:[#allocation4 + $0x20] sm:$0xff]
        %v318 = vld [vmem:[#allocation4 + $0x28] sm:$0xff]
        %v319 = vld [vmem:[#allocation4 + $0x30] sm:$0xff]
        %v320 = vld [vmem:[#allocation4 + $0x38] sm:$0xff]
        %v321 = vld [vmem:[#allocation4 + $0x40] sm:$0xff]
        %v322 = vld [vmem:[#allocation4 + $0x48] sm:$0xff]
        %v323 = vld [vmem:[#allocation4 + $0x50] sm:$0xff]
        %v324 = vld [vmem:[#allocation4 + $0x58] sm:$0xff]
        %v325 = vld [vmem:[#allocation4 + $0x60] sm:$0xff]
        %v326 = vld [vmem:[#allocation4 + $0x68] sm:$0xff]
        %v327 = vld [vmem:[#allocation4 + $0x70] sm:$0xff]
        %v328 = vld [vmem:[#allocation4 + $0x78] sm:$0xff]
        %v329 = vld [vmem:[#allocation4 + $0x80] sm:$0xff]
        %v330 = vld [vmem:[#allocation4 + $0x88] sm:$0xff]
        %v331 = vld [vmem:[#allocation4 + $0x90] sm:$0xff]
        %v332 = vld [vmem:[#allocation4 + $0x98] sm:$0xff]
        %v333 = vld [vmem:[#allocation4 + $0xa0] sm:$0xff]
        %v334 = vld [vmem:[#allocation4 + $0xa8] sm:$0xff]
        %v335 = vld [vmem:[#allocation4 + $0xb0] sm:$0xff]
        %v336 = vld [vmem:[#allocation4 + $0xb8] sm:$0xff]
        %v337 = vld [vmem:[#allocation4 + $0xc0] sm:$0xff]
        %v338 = vld [vmem:[#allocation4 + $0xc8] sm:$0xff]
        %v339 = vld [vmem:[#allocation4 + $0xd0] sm:$0xff]
        %v340 = vld [vmem:[#allocation4 + $0xd8] sm:$0xff]
        %v341 = vld [vmem:[#allocation4 + $0xe0] sm:$0xff]
        %v342 = vld [vmem:[#allocation4 + $0xe8] sm:$0xff]
        %v343 = vld [vmem:[#allocation4 + $0xf0] sm:$0xff]
        %v344 = vld [vmem:[#allocation4 + $0xf8] sm:$0xff]
        %v345 = vld [vmem:[#allocation4 + $0x100] sm:$0xff]
        %v346 = vld [vmem:[#allocation4 + $0x108] sm:$0xff]
        %v347 = vld [vmem:[#allocation4 + $0x110] sm:$0xff]
        %v348 = vld [vmem:[#allocation4 + $0x118] sm:$0xff]
        %v349 = vld [vmem:[#allocation4 + $0x120] sm:$0xff]
        %v350 = vld [vmem:[#allocation4 + $0x128] sm:$0xff]
        %v351 = vld [vmem:[#allocation4 + $0x130] sm:$0xff]
        %v352 = vld [vmem:[#allocation4 + $0x138] sm:$0xff]
        %v353 = vld [vmem:[#allocation4 + $0x140] sm:$0xff]
        %v354 = vld [vmem:[#allocation4 + $0x148] sm:$0xff]
        %v355 = vld [vmem:[#allocation4 + $0x150] sm:$0xff]
        %v356 = vld [vmem:[#allocation4 + $0x158] sm:$0xff]
        %v357 = vld [vmem:[#allocation4 + $0x160] sm:$0xff]
        %v358 = vld [vmem:[#allocation4 + $0x168] sm:$0xff]
        %v359 = vld [vmem:[#allocation4 + $0x170] sm:$0xff]
        %v360 = vld [vmem:[#allocation4 + $0x178] sm:$0xff]
        %v361 = vld [vmem:[#allocation4 + $0x180] sm:$0xff]
        %v362 = vld [vmem:[#allocation4 + $0x188] sm:$0xff]
        %v363 = vld [vmem:[#allocation4 + $0x190] sm:$0xff]
        %v364 = vld [vmem:[#allocation4 + $0x198] sm:$0xff]
        %v365 = vld [vmem:[#allocation4 + $0x1a0] sm:$0xff]
        %v366 = vld [vmem:[#allocation4 + $0x1a8] sm:$0xff]
        %v367 = vld [vmem:[#allocation4 + $0x1b0] sm:$0xff]
        %v368 = vld [vmem:[#allocation4 + $0x1b8] sm:$0xff]
        %v369 = vld [vmem:[#allocation4 + $0x1c0] sm:$0xff]
        %v370 = vld [vmem:[#allocation4 + $0x1c8] sm:$0xff]
        %v371 = vld [vmem:[#allocation4 + $0x1d0] sm:$0xff]
        %v372 = vld [vmem:[#allocation4 + $0x1d8] sm:$0xff]
        %v373 = vld [vmem:[#allocation4 + $0x1e0] sm:$0xff]
        %v374 = vld [vmem:[#allocation4 + $0x1e8] sm:$0xff]
        %v375 = vld [vmem:[#allocation4 + $0x1f0] sm:$0xff]
        %v376 = vld [vmem:[#allocation4 + $0x1f8] sm:$0xff]
        %v377 = vld [vmem:[#allocation4 + $0x200] sm:$0xff]
        %v378 = vld [vmem:[#allocation4 + $0x208] sm:$0xff]
        %v379 = vld [vmem:[#allocation4 + $0x210] sm:$0xff]
        %v380 = vld [vmem:[#allocation4 + $0x218] sm:$0xff]
        %v381 = vld [vmem:[#allocation4 + $0x220] sm:$0xff]
        %v382 = vld [vmem:[#allocation4 + $0x228] sm:$0xff]
        %v383 = vld [vmem:[#allocation4 + $0x230] sm:$0xff]
        %v384 = vld [vmem:[#allocation4 + $0x238] sm:$0xff]
        %v385 = vld [vmem:[#allocation4 + $0x240] sm:$0xff]
        %v386 = vld [vmem:[#allocation4 + $0x248] sm:$0xff]
        %v387 = vld [vmem:[#allocation4 + $0x250] sm:$0xff]
        %v388 = vld [vmem:[#allocation4 + $0x258] sm:$0xff]
        %v389 = vld [vmem:[#allocation4 + $0x260] sm:$0xff]
        %v390 = vld [vmem:[#allocation4 + $0x268] sm:$0xff]
        %v391 = vld [vmem:[#allocation4 + $0x270] sm:$0xff]
        %v392 = vld [vmem:[#allocation4 + $0x278] sm:$0xff]
        %v393 = vld [vmem:[#allocation4 + $0x280] sm:$0xff]
        %v394 = vld [vmem:[#allocation4 + $0x288] sm:$0xff]
        %v395 = vld [vmem:[#allocation4 + $0x290] sm:$0xff]
        %v396 = vld [vmem:[#allocation4 + $0x298] sm:$0xff]
        %v397 = vld [vmem:[#allocation4 + $0x2a0] sm:$0xff]
        %v398 = vld [vmem:[#allocation4 + $0x2a8] sm:$0xff]
        %v399 = vld [vmem:[#allocation4 + $0x2b0] sm:$0xff]
        %v400 = vld [vmem:[#allocation4 + $0x2b8] sm:$0xff]
        %v401 = vld [vmem:[#allocation4 + $0x2c0] sm:$0xff]
        %v402 = vld [vmem:[#allocation4 + $0x2c8] sm:$0xff]
        %v403 = vld [vmem:[#allocation4 + $0x2d0] sm:$0xff]
        %v404 = vld [vmem:[#allocation4 + $0x2d8] sm:$0xff]
        %v405 = vld [vmem:[#allocation4 + $0x2e0] sm:$0xff]
        %v406 = vld [vmem:[#allocation4 + $0x2e8] sm:$0xff]
        %v407 = vld [vmem:[#allocation4 + $0x2f0] sm:$0xff]
        %v408 = vld [vmem:[#allocation4 + $0x2f8] sm:$0xff]
        %v409 = vld [vmem:[%s2] sm:$0x3]
        %v411 = vlaneseq
        %v412 = vshrl.u32 %v411, 7
        %v413 = vsub.s32 0, %v412
        %v414 = vrot.slane %v409, %v413
        %v415 = vlaneseq
        %v416 = vshrl.u32 %v415, 7
        %v417 = vsub.s32 1, %v416
        %v418 = vrot.slane %v409, %v417
        %v460 = vunpack.c.l.b16 %v274
        %v461 = vunpack.c.h.b16 %v274
        %v462 = vunpack.c.l.b16 %v275
        %v463 = vunpack.c.h.b16 %v275
        %v464 = vunpack.c.l.b16 %v276
        %v465 = vunpack.c.h.b16 %v276
        %v466 = vunpack.c.l.b16 %v277
        %v467 = vunpack.c.h.b16 %v277
        %v468 = vunpack.c.l.b16 %v278
        %v469 = vunpack.c.h.b16 %v278
        %v470 = vunpack.c.l.b16 %v279
        %v471 = vunpack.c.h.b16 %v279
        %v472 = vunpack.c.l.b16 %v280
        %v473 = vunpack.c.h.b16 %v280
        %v474 = vunpack.c.l.b16 %v281
        %v475 = vunpack.c.h.b16 %v281
        %v476 = vunpack.c.l.b16 %v282
        %v477 = vunpack.c.h.b16 %v282
        %v478 = vunpack.c.l.b16 %v283
        %v479 = vunpack.c.h.b16 %v283
        %v480 = vunpack.c.l.b16 %v284
        %v481 = vunpack.c.h.b16 %v284
        %v482 = vunpack.c.l.b16 %v285
        %v483 = vunpack.c.h.b16 %v285
        %v484 = vunpack.c.l.b16 %v286
        %v485 = vunpack.c.h.b16 %v286
        %v486 = vunpack.c.l.b16 %v287
        %v487 = vunpack.c.h.b16 %v287
        %v488 = vunpack.c.l.b16 %v288
        %v489 = vunpack.c.h.b16 %v288
        %v490 = vunpack.c.l.b16 %v289
        %v491 = vunpack.c.h.b16 %v289
        %v492 = vunpack.c.l.b16 %v290
        %v493 = vunpack.c.h.b16 %v290
        %v494 = vunpack.c.l.b16 %v291
        %v495 = vunpack.c.h.b16 %v291
        %v496 = vunpack.c.l.b16 %v292
        %v497 = vunpack.c.h.b16 %v292
        %v498 = vunpack.c.l.b16 %v293
        %v499 = vunpack.c.h.b16 %v293
        %v500 = vunpack.c.l.b16 %v294
        %v501 = vunpack.c.h.b16 %v294
        %v502 = vunpack.c.l.b16 %v295
        %v503 = vunpack.c.h.b16 %v295
        %v504 = vunpack.c.l.b16 %v296
        %v505 = vunpack.c.h.b16 %v296
        %v506 = vunpack.c.l.b16 %v297
        %v507 = vunpack.c.h.b16 %v297
        %v508 = vunpack.c.l.b16 %v298
        %v509 = vunpack.c.h.b16 %v298
        %v510 = vunpack.c.l.b16 %v299
        %v511 = vunpack.c.h.b16 %v299
        %v512 = vunpack.c.l.b16 %v300
        %v513 = vunpack.c.h.b16 %v300
        %v514 = vunpack.c.l.b16 %v301
        %v515 = vunpack.c.h.b16 %v301
        %v516 = vunpack.c.l.b16 %v302
        %v517 = vunpack.c.h.b16 %v302
        %v518 = vunpack.c.l.b16 %v303
        %v519 = vunpack.c.h.b16 %v303
        %v520 = vunpack.c.l.b16 %v304
        %v521 = vunpack.c.h.b16 %v304
        %v522 = vunpack.c.l.b16 %v305
        %v523 = vunpack.c.h.b16 %v305
        %v524 = vunpack.c.l.b16 %v306
        %v525 = vunpack.c.h.b16 %v306
        %v526 = vunpack.c.l.b16 %v307
        %v527 = vunpack.c.h.b16 %v307
        %v528 = vunpack.c.l.b16 %v308
        %v529 = vunpack.c.h.b16 %v308
        %v530 = vunpack.c.l.b16 %v309
        %v531 = vunpack.c.h.b16 %v309
        %v532 = vunpack.c.l.b16 %v310
        %v533 = vunpack.c.h.b16 %v310
        %v534 = vunpack.c.l.b16 %v311
        %v535 = vunpack.c.h.b16 %v311
        %v536 = vunpack.c.l.b16 %v312
        %v537 = vunpack.c.h.b16 %v312
        %v538 = vpack.c.b16 %v466, %v460
        %v539 = vpack.c.b16 %v467, %v461
        %v540 = vpack.c.b16 %v468, %v462
        %v541 = vpack.c.b16 %v469, %v463
        %v542 = vpack.c.b16 %v470, %v464
        %v543 = vpack.c.b16 %v471, %v465
        %v544 = vpack.c.b16 %v478, %v472
        %v545 = vpack.c.b16 %v479, %v473
        %v546 = vpack.c.b16 %v480, %v474
        %v547 = vpack.c.b16 %v481, %v475
        %v548 = vpack.c.b16 %v482, %v476
        %v549 = vpack.c.b16 %v483, %v477
        %v550 = vpack.c.b16 %v490, %v484
        %v551 = vpack.c.b16 %v491, %v485
        %v552 = vpack.c.b16 %v492, %v486
        %v553 = vpack.c.b16 %v493, %v487
        %v554 = vpack.c.b16 %v494, %v488
        %v555 = vpack.c.b16 %v495, %v489
        %v556 = vpack.c.b16 %v502, %v496
        %v557 = vpack.c.b16 %v503, %v497
        %v558 = vpack.c.b16 %v504, %v498
        %v559 = vpack.c.b16 %v505, %v499
        %v560 = vpack.c.b16 %v506, %v500
        %v561 = vpack.c.b16 %v507, %v501
        %v562 = vpack.c.b16 %v514, %v508
        %v563 = vpack.c.b16 %v515, %v509
        %v564 = vpack.c.b16 %v516, %v510
        %v565 = vpack.c.b16 %v517, %v511
        %v566 = vpack.c.b16 %v518, %v512
        %v567 = vpack.c.b16 %v519, %v513
        %v568 = vpack.c.b16 %v526, %v520
        %v569 = vpack.c.b16 %v527, %v521
        %v570 = vpack.c.b16 %v528, %v522
        %v571 = vpack.c.b16 %v529, %v523
        %v572 = vpack.c.b16 %v530, %v524
        %v573 = vpack.c.b16 %v531, %v525
        %v574 = vpack.c.b16 %v532, %v532
        %v575 = vpack.c.b16 %v533, %v533
        %v576 = vpack.c.b16 %v534, %v534
        %v577 = vpack.c.b16 %v535, %v535
        %v578 = vpack.c.b16 %v536, %v536
        %v579 = vpack.c.b16 %v537, %v537
        %v718 = vunpack.c.l.b16 %v313
        %v719 = vunpack.c.h.b16 %v313
        %v720 = vunpack.c.l.b16 %v314
        %v721 = vunpack.c.h.b16 %v314
        %v722 = vunpack.c.l.b16 %v315
        %v723 = vunpack.c.h.b16 %v315
        %v724 = vunpack.c.l.b16 %v316
        %v725 = vunpack.c.h.b16 %v316
        %v726 = vunpack.c.l.b16 %v317
        %v727 = vunpack.c.h.b16 %v317
        %v728 = vunpack.c.l.b16 %v318
        %v729 = vunpack.c.h.b16 %v318
        %v730 = vunpack.c.l.b16 %v319
        %v731 = vunpack.c.h.b16 %v319
        %v732 = vunpack.c.l.b16 %v320
        %v733 = vunpack.c.h.b16 %v320
        %v734 = vunpack.c.l.b16 %v321
        %v735 = vunpack.c.h.b16 %v321
        %v736 = vunpack.c.l.b16 %v322
        %v737 = vunpack.c.h.b16 %v322
        %v738 = vunpack.c.l.b16 %v323
        %v739 = vunpack.c.h.b16 %v323
        %v740 = vunpack.c.l.b16 %v324
        %v741 = vunpack.c.h.b16 %v324
        %v742 = vunpack.c.l.b16 %v325
        %v743 = vunpack.c.h.b16 %v325
        %v744 = vunpack.c.l.b16 %v326
        %v745 = vunpack.c.h.b16 %v326
        %v746 = vunpack.c.l.b16 %v327
        %v747 = vunpack.c.h.b16 %v327
        %v748 = vunpack.c.l.b16 %v328
        %v749 = vunpack.c.h.b16 %v328
        %v750 = vunpack.c.l.b16 %v329
        %v751 = vunpack.c.h.b16 %v329
        %v752 = vunpack.c.l.b16 %v330
        %v753 = vunpack.c.h.b16 %v330
        %v754 = vunpack.c.l.b16 %v331
        %v755 = vunpack.c.h.b16 %v331
        %v756 = vunpack.c.l.b16 %v332
        %v757 = vunpack.c.h.b16 %v332
        %v758 = vunpack.c.l.b16 %v333
        %v759 = vunpack.c.h.b16 %v333
        %v760 = vunpack.c.l.b16 %v334
        %v761 = vunpack.c.h.b16 %v334
        %v762 = vunpack.c.l.b16 %v335
        %v763 = vunpack.c.h.b16 %v335
        %v764 = vunpack.c.l.b16 %v336
        %v765 = vunpack.c.h.b16 %v336
        %v766 = vunpack.c.l.b16 %v337
        %v767 = vunpack.c.h.b16 %v337
        %v768 = vunpack.c.l.b16 %v338
        %v769 = vunpack.c.h.b16 %v338
        %v770 = vunpack.c.l.b16 %v339
        %v771 = vunpack.c.h.b16 %v339
        %v772 = vunpack.c.l.b16 %v340
        %v773 = vunpack.c.h.b16 %v340
        %v774 = vunpack.c.l.b16 %v341
        %v775 = vunpack.c.h.b16 %v341
        %v776 = vunpack.c.l.b16 %v342
        %v777 = vunpack.c.h.b16 %v342
        %v778 = vunpack.c.l.b16 %v343
        %v779 = vunpack.c.h.b16 %v343
        %v780 = vunpack.c.l.b16 %v344
        %v781 = vunpack.c.h.b16 %v344
        %v782 = vunpack.c.l.b16 %v345
        %v783 = vunpack.c.h.b16 %v345
        %v784 = vunpack.c.l.b16 %v346
        %v785 = vunpack.c.h.b16 %v346
        %v786 = vunpack.c.l.b16 %v347
        %v787 = vunpack.c.h.b16 %v347
        %v788 = vunpack.c.l.b16 %v348
        %v789 = vunpack.c.h.b16 %v348
        %v790 = vunpack.c.l.b16 %v349
        %v791 = vunpack.c.h.b16 %v349
        %v792 = vunpack.c.l.b16 %v350
        %v793 = vunpack.c.h.b16 %v350
        %v794 = vunpack.c.l.b16 %v351
        %v795 = vunpack.c.h.b16 %v351
        %v796 = vunpack.c.l.b16 %v352
        %v797 = vunpack.c.h.b16 %v352
        %v798 = vunpack.c.l.b16 %v353
        %v799 = vunpack.c.h.b16 %v353
        %v800 = vunpack.c.l.b16 %v354
        %v801 = vunpack.c.h.b16 %v354
        %v802 = vunpack.c.l.b16 %v355
        %v803 = vunpack.c.h.b16 %v355
        %v804 = vunpack.c.l.b16 %v356
        %v805 = vunpack.c.h.b16 %v356
        %v806 = vunpack.c.l.b16 %v357
        %v807 = vunpack.c.h.b16 %v357
        %v808 = vunpack.c.l.b16 %v358
        %v809 = vunpack.c.h.b16 %v358
        %v810 = vunpack.c.l.b16 %v359
        %v811 = vunpack.c.h.b16 %v359
        %v812 = vunpack.c.l.b16 %v360
        %v813 = vunpack.c.h.b16 %v360
        %v814 = vunpack.c.l.b16 %v361
        %v815 = vunpack.c.h.b16 %v361
        %v816 = vunpack.c.l.b16 %v362
        %v817 = vunpack.c.h.b16 %v362
        %v818 = vunpack.c.l.b16 %v363
        %v819 = vunpack.c.h.b16 %v363
        %v820 = vunpack.c.l.b16 %v364
        %v821 = vunpack.c.h.b16 %v364
        %v822 = vunpack.c.l.b16 %v365
        %v823 = vunpack.c.h.b16 %v365
        %v824 = vunpack.c.l.b16 %v366
        %v825 = vunpack.c.h.b16 %v366
        %v826 = vunpack.c.l.b16 %v367
        %v827 = vunpack.c.h.b16 %v367
        %v828 = vunpack.c.l.b16 %v368
        %v829 = vunpack.c.h.b16 %v368
        %v830 = vunpack.c.l.b16 %v369
        %v831 = vunpack.c.h.b16 %v369
        %v832 = vunpack.c.l.b16 %v370
        %v833 = vunpack.c.h.b16 %v370
        %v834 = vunpack.c.l.b16 %v371
        %v835 = vunpack.c.h.b16 %v371
        %v836 = vunpack.c.l.b16 %v372
        %v837 = vunpack.c.h.b16 %v372
        %v838 = vunpack.c.l.b16 %v373
        %v839 = vunpack.c.h.b16 %v373
        %v840 = vunpack.c.l.b16 %v374
        %v841 = vunpack.c.h.b16 %v374
        %v842 = vunpack.c.l.b16 %v375
        %v843 = vunpack.c.h.b16 %v375
        %v844 = vunpack.c.l.b16 %v376
        %v845 = vunpack.c.h.b16 %v376
        %v846 = vunpack.c.l.b16 %v377
        %v847 = vunpack.c.h.b16 %v377
        %v848 = vunpack.c.l.b16 %v378
        %v849 = vunpack.c.h.b16 %v378
        %v850 = vunpack.c.l.b16 %v379
        %v851 = vunpack.c.h.b16 %v379
        %v852 = vunpack.c.l.b16 %v380
        %v853 = vunpack.c.h.b16 %v380
        %v854 = vunpack.c.l.b16 %v381
        %v855 = vunpack.c.h.b16 %v381
        %v856 = vunpack.c.l.b16 %v382
        %v857 = vunpack.c.h.b16 %v382
        %v858 = vunpack.c.l.b16 %v383
        %v859 = vunpack.c.h.b16 %v383
        %v860 = vunpack.c.l.b16 %v384
        %v861 = vunpack.c.h.b16 %v384
        %v862 = vunpack.c.l.b16 %v385
        %v863 = vunpack.c.h.b16 %v385
        %v864 = vunpack.c.l.b16 %v386
        %v865 = vunpack.c.h.b16 %v386
        %v866 = vunpack.c.l.b16 %v387
        %v867 = vunpack.c.h.b16 %v387
        %v868 = vunpack.c.l.b16 %v388
        %v869 = vunpack.c.h.b16 %v388
        %v870 = vunpack.c.l.b16 %v389
        %v871 = vunpack.c.h.b16 %v389
        %v872 = vunpack.c.l.b16 %v390
        %v873 = vunpack.c.h.b16 %v390
        %v874 = vunpack.c.l.b16 %v391
        %v875 = vunpack.c.h.b16 %v391
        %v876 = vunpack.c.l.b16 %v392
        %v877 = vunpack.c.h.b16 %v392
        %v878 = vunpack.c.l.b16 %v393
        %v879 = vunpack.c.h.b16 %v393
        %v880 = vunpack.c.l.b16 %v394
        %v881 = vunpack.c.h.b16 %v394
        %v882 = vunpack.c.l.b16 %v395
        %v883 = vunpack.c.h.b16 %v395
        %v884 = vunpack.c.l.b16 %v396
        %v885 = vunpack.c.h.b16 %v396
        %v886 = vunpack.c.l.b16 %v397
        %v887 = vunpack.c.h.b16 %v397
        %v888 = vunpack.c.l.b16 %v398
        %v889 = vunpack.c.h.b16 %v398
        %v890 = vunpack.c.l.b16 %v399
        %v891 = vunpack.c.h.b16 %v399
        %v892 = vunpack.c.l.b16 %v400
        %v893 = vunpack.c.h.b16 %v400
        %v894 = vunpack.c.l.b16 %v401
        %v895 = vunpack.c.h.b16 %v401
        %v896 = vunpack.c.l.b16 %v402
        %v897 = vunpack.c.h.b16 %v402
        %v898 = vunpack.c.l.b16 %v403
        %v899 = vunpack.c.h.b16 %v403
        %v900 = vunpack.c.l.b16 %v404
        %v901 = vunpack.c.h.b16 %v404
        %v902 = vunpack.c.l.b16 %v405
        %v903 = vunpack.c.h.b16 %v405
        %v904 = vunpack.c.l.b16 %v406
        %v905 = vunpack.c.h.b16 %v406
        %v906 = vunpack.c.l.b16 %v407
        %v907 = vunpack.c.h.b16 %v407
        %v908 = vunpack.c.l.b16 %v408
        %v909 = vunpack.c.h.b16 %v408
        %v910 = vpack.c.b16 %v720, %v718
        %v911 = vpack.c.b16 %v721, %v719
        %v912 = vpack.c.b16 %v724, %v722
        %v913 = vpack.c.b16 %v725, %v723
        %v914 = vpack.c.b16 %v728, %v726
        %v915 = vpack.c.b16 %v729, %v727
        %v916 = vpack.c.b16 %v732, %v730
        %v917 = vpack.c.b16 %v733, %v731
        %v918 = vpack.c.b16 %v736, %v734
        %v919 = vpack.c.b16 %v737, %v735
        %v920 = vpack.c.b16 %v740, %v738
        %v921 = vpack.c.b16 %v741, %v739
        %v922 = vpack.c.b16 %v744, %v742
        %v923 = vpack.c.b16 %v745, %v743
        %v924 = vpack.c.b16 %v748, %v746
        %v925 = vpack.c.b16 %v749, %v747
        %v926 = vpack.c.b16 %v752, %v750
        %v927 = vpack.c.b16 %v753, %v751
        %v928 = vpack.c.b16 %v756, %v754
        %v929 = vpack.c.b16 %v757, %v755
        %v930 = vpack.c.b16 %v760, %v758
        %v931 = vpack.c.b16 %v761, %v759
        %v932 = vpack.c.b16 %v764, %v762
        %v933 = vpack.c.b16 %v765, %v763
        %v934 = vpack.c.b16 %v768, %v766
        %v935 = vpack.c.b16 %v769, %v767
        %v936 = vpack.c.b16 %v772, %v770
        %v937 = vpack.c.b16 %v773, %v771
        %v938 = vpack.c.b16 %v776, %v774
        %v939 = vpack.c.b16 %v777, %v775
        %v940 = vpack.c.b16 %v780, %v778
        %v941 = vpack.c.b16 %v781, %v779
        %v942 = vpack.c.b16 %v784, %v782
        %v943 = vpack.c.b16 %v785, %v783
        %v944 = vpack.c.b16 %v788, %v786
        %v945 = vpack.c.b16 %v789, %v787
        %v946 = vpack.c.b16 %v792, %v790
        %v947 = vpack.c.b16 %v793, %v791
        %v948 = vpack.c.b16 %v796, %v794
        %v949 = vpack.c.b16 %v797, %v795
        %v950 = vpack.c.b16 %v800, %v798
        %v951 = vpack.c.b16 %v801, %v799
        %v952 = vpack.c.b16 %v804, %v802
        %v953 = vpack.c.b16 %v805, %v803
        %v954 = vpack.c.b16 %v808, %v806
        %v955 = vpack.c.b16 %v809, %v807
        %v956 = vpack.c.b16 %v812, %v810
        %v957 = vpack.c.b16 %v813, %v811
        %v958 = vpack.c.b16 %v816, %v814
        %v959 = vpack.c.b16 %v817, %v815
        %v960 = vpack.c.b16 %v820, %v818
        %v961 = vpack.c.b16 %v821, %v819
        %v962 = vpack.c.b16 %v824, %v822
        %v963 = vpack.c.b16 %v825, %v823
        %v964 = vpack.c.b16 %v828, %v826
        %v965 = vpack.c.b16 %v829, %v827
        %v966 = vpack.c.b16 %v832, %v830
        %v967 = vpack.c.b16 %v833, %v831
        %v968 = vpack.c.b16 %v836, %v834
        %v969 = vpack.c.b16 %v837, %v835
        %v970 = vpack.c.b16 %v840, %v838
        %v971 = vpack.c.b16 %v841, %v839
        %v972 = vpack.c.b16 %v844, %v842
        %v973 = vpack.c.b16 %v845, %v843
        %v974 = vpack.c.b16 %v848, %v846
        %v975 = vpack.c.b16 %v849, %v847
        %v976 = vpack.c.b16 %v852, %v850
        %v977 = vpack.c.b16 %v853, %v851
        %v978 = vpack.c.b16 %v856, %v854
        %v979 = vpack.c.b16 %v857, %v855
        %v980 = vpack.c.b16 %v860, %v858
        %v981 = vpack.c.b16 %v861, %v859
        %v982 = vpack.c.b16 %v864, %v862
        %v983 = vpack.c.b16 %v865, %v863
        %v984 = vpack.c.b16 %v868, %v866
        %v985 = vpack.c.b16 %v869, %v867
        %v986 = vpack.c.b16 %v872, %v870
        %v987 = vpack.c.b16 %v873, %v871
        %v988 = vpack.c.b16 %v876, %v874
        %v989 = vpack.c.b16 %v877, %v875
        %v990 = vpack.c.b16 %v880, %v878
        %v991 = vpack.c.b16 %v881, %v879
        %v992 = vpack.c.b16 %v884, %v882
        %v993 = vpack.c.b16 %v885, %v883
        %v994 = vpack.c.b16 %v888, %v886
        %v995 = vpack.c.b16 %v889, %v887
        %v996 = vpack.c.b16 %v892, %v890
        %v997 = vpack.c.b16 %v893, %v891
        %v998 = vpack.c.b16 %v896, %v894
        %v999 = vpack.c.b16 %v897, %v895
        %v1000 = vpack.c.b16 %v900, %v898
        %v1001 = vpack.c.b16 %v901, %v899
        %v1002 = vpack.c.b16 %v904, %v902
        %v1003 = vpack.c.b16 %v905, %v903
        %v1004 = vpack.c.b16 %v908, %v906
        %v1005 = vpack.c.b16 %v909, %v907
        %1102 = vmatprep.subr.bf16.mxu0 %v911
        %1103 = vmatpush1.bf16.msra.mxu0 %v910
        %1104 = vmatprep.subr.bf16.mxu0 %v913
        %1105 = vmatpush1.bf16.msra.mxu0 %v912
        %1106 = vmatprep.subr.bf16.mxu0 %v915
        %1107 = vmatpush1.bf16.msra.mxu0 %v914
        %1108 = vmatprep.subr.bf16.mxu0 %v917
        %1109 = vmatpush1.bf16.msra.mxu0 %v916
        %1110 = vmatprep.subr.bf16.mxu0 %v919
        %1111 = vmatpush1.bf16.msra.mxu0 %v918
        %1112 = vmatprep.subr.bf16.mxu0 %v921
        %1113 = vmatpush1.bf16.msra.mxu0 %v920
        %1114 = vmatprep.subr.bf16.mxu0 %v923
        %1115 = vmatpush1.bf16.msra.mxu0 %v922
        %1116 = vmatprep.subr.bf16.mxu0 %v925
        %1117 = vmatpush1.bf16.msra.mxu0 %v924
        %1118 = vmatprep.subr.bf16.mxu0 %v927
        %1119 = vmatpush1.bf16.msra.mxu0 %v926
        %1120 = vmatprep.subr.bf16.mxu0 %v929
        %1121 = vmatpush1.bf16.msra.mxu0 %v928
        %1122 = vmatprep.subr.bf16.mxu0 %v931
        %1123 = vmatpush1.bf16.msra.mxu0 %v930
        %1124 = vmatprep.subr.bf16.mxu0 %v933
        %1125 = vmatpush1.bf16.msra.mxu0 %v932
        %1126 = vmatprep.subr.bf16.mxu0 %v935
        %1127 = vmatpush1.bf16.msra.mxu0 %v934
        %1128 = vmatprep.subr.bf16.mxu0 %v937
        %1129 = vmatpush1.bf16.msra.mxu0 %v936
        %1130 = vmatprep.subr.bf16.mxu0 %v939
        %1131 = vmatpush1.bf16.msra.mxu0 %v938
        %1132 = vmatprep.subr.bf16.mxu0 %v941
        %1133 = vmatpush1.bf16.msra.mxu0 %v940
        %1134 = vmatprep.mubr.bf16.mxu0 %v539
        %1135 = vmatmul.mubr.bf16.gmra.mrb[0].mxu0 %v538
        %v1136 = vpop.f32.mrb[0].mxu0
        %v1137 = vadd.f32 %v414, %v1136
        %v1138 = vpop.f32.mrb[0].mxu0
        %v1139 = vadd.f32 %v418, %v1138
        %v1140 = vpop.f32.mrb[0].mxu0
        %v1141 = vadd.f32 %v414, %v1140
        %v1142 = vpop.f32.mrb[0].mxu0
        %v1143 = vadd.f32 %v418, %v1142
        %1144 = vmatprep.mubr.bf16.mxu0 %v545
        %1145 = vmatmul.mubr.bf16.gmra.mrb[0].mxu0 %v544
        %v1146 = vpop.f32.mrb[0].mxu0
        %v1147 = vadd.f32 %v414, %v1146
        %v1148 = vpop.f32.mrb[0].mxu0
        %v1149 = vadd.f32 %v418, %v1148
        %v1150 = vpop.f32.mrb[0].mxu0
        %v1151 = vadd.f32 %v414, %v1150
        %v1152 = vpop.f32.mrb[0].mxu0
        %v1153 = vadd.f32 %v418, %v1152
        %1154 = vmatprep.mubr.bf16.mxu0 %v551
        %1155 = vmatmul.mubr.bf16.gmra.mrb[0].mxu0 %v550
        %v1156 = vpop.f32.mrb[0].mxu0
        %v1157 = vadd.f32 %v414, %v1156
        %v1158 = vpop.f32.mrb[0].mxu0
        %v1159 = vadd.f32 %v418, %v1158
        %v1160 = vpop.f32.mrb[0].mxu0
        %v1161 = vadd.f32 %v414, %v1160
        %v1162 = vpop.f32.mrb[0].mxu0
        %v1163 = vadd.f32 %v418, %v1162
        %1164 = vmatprep.mubr.bf16.mxu0 %v557
        %1165 = vmatmul.mubr.bf16.gmra.mrb[0].mxu0 %v556
        %v1166 = vpop.f32.mrb[0].mxu0
        %v1167 = vadd.f32 %v414, %v1166
        %v1168 = vpop.f32.mrb[0].mxu0
        %v1169 = vadd.f32 %v418, %v1168
        %v1170 = vpop.f32.mrb[0].mxu0
        %v1171 = vadd.f32 %v414, %v1170
        %v1172 = vpop.f32.mrb[0].mxu0
        %v1173 = vadd.f32 %v418, %v1172
        %1174 = vmatprep.mubr.bf16.mxu0 %v563
        %1175 = vmatmul.mubr.bf16.gmra.mrb[0].mxu0 %v562
        %v1176 = vpop.f32.mrb[0].mxu0
        %v1177 = vadd.f32 %v414, %v1176
        %v1178 = vpop.f32.mrb[0].mxu0
        %v1179 = vadd.f32 %v418, %v1178
        %v1180 = vpop.f32.mrb[0].mxu0
        %v1181 = vadd.f32 %v414, %v1180
        %v1182 = vpop.f32.mrb[0].mxu0
        %v1183 = vadd.f32 %v418, %v1182
        %1184 = vmatprep.mubr.bf16.mxu0 %v569
        %1185 = vmatmul.mubr.bf16.gmra.mrb[0].mxu0 %v568
        %v1186 = vpop.f32.mrb[0].mxu0
        %v1187 = vadd.f32 %v414, %v1186
        %v1188 = vpop.f32.mrb[0].mxu0
        %v1189 = vadd.f32 %v418, %v1188
        %v1190 = vpop.f32.mrb[0].mxu0
        %v1191 = vadd.f32 %v414, %v1190
        %v1192 = vpop.f32.mrb[0].mxu0
        %v1193 = vadd.f32 %v418, %v1192
        %1194 = vmatprep.mubr.bf16.mxu0 %v575
        %1195 = vmatmul.mubr.bf16.gmra.mrb[0].mxu0 %v574
        %v1196 = vpop.f32.mrb[0].mxu0
        %v1197 = vadd.f32 %v414, %v1196
        %v1198 = vpop.f32.mrb[0].mxu0
        %v1199 = vadd.f32 %v418, %v1198
        %v1200 = vpop.f32.mrb[0].mxu0
        %v1201 = vpop.f32.mrb[0].mxu0
        %1202 = vdwg.mxu0
        %1203 = vmatprep.subr.bf16.mxu0 %v943
        %1204 = vmatpush1.bf16.msra.mxu0 %v942
        %1205 = vmatprep.subr.bf16.mxu0 %v945
        %1206 = vmatpush1.bf16.msra.mxu0 %v944
        %1207 = vmatprep.subr.bf16.mxu0 %v947
        %1208 = vmatpush1.bf16.msra.mxu0 %v946
        %1209 = vmatprep.subr.bf16.mxu0 %v949
        %1210 = vmatpush1.bf16.msra.mxu0 %v948
        %1211 = vmatprep.subr.bf16.mxu0 %v951
        %1212 = vmatpush1.bf16.msra.mxu0 %v950
        %1213 = vmatprep.subr.bf16.mxu0 %v953
        %1214 = vmatpush1.bf16.msra.mxu0 %v952
        %1215 = vmatprep.subr.bf16.mxu0 %v955
        %1216 = vmatpush1.bf16.msra.mxu0 %v954
        %1217 = vmatprep.subr.bf16.mxu0 %v957
        %1218 = vmatpush1.bf16.msra.mxu0 %v956
        %1219 = vmatprep.subr.bf16.mxu0 %v959
        %1220 = vmatpush1.bf16.msra.mxu0 %v958
        %1221 = vmatprep.subr.bf16.mxu0 %v961
        %1222 = vmatpush1.bf16.msra.mxu0 %v960
        %1223 = vmatprep.subr.bf16.mxu0 %v963
        %1224 = vmatpush1.bf16.msra.mxu0 %v962
        %1225 = vmatprep.subr.bf16.mxu0 %v965
        %1226 = vmatpush1.bf16.msra.mxu0 %v964
        %1227 = vmatprep.subr.bf16.mxu0 %v967
        %1228 = vmatpush1.bf16.msra.mxu0 %v966
        %1229 = vmatprep.subr.bf16.mxu0 %v969
        %1230 = vmatpush1.bf16.msra.mxu0 %v968
        %1231 = vmatprep.subr.bf16.mxu0 %v971
        %1232 = vmatpush1.bf16.msra.mxu0 %v970
        %1233 = vmatprep.subr.bf16.mxu0 %v973
        %1234 = vmatpush1.bf16.msra.mxu0 %v972
        %1235 = vmatprep.mubr.bf16.mxu0 %v541
        %1236 = vmatmul.mubr.bf16.gmra.mrb[0].mxu0 %v540
        %v1237 = vpop.f32.mrb[0].mxu0
        %v1238 = vadd.f32 %v1137, %v1237
        %v1239 = vpop.f32.mrb[0].mxu0
        %v1240 = vadd.f32 %v1139, %v1239
        %v1241 = vpop.f32.mrb[0].mxu0
        %v1242 = vadd.f32 %v1141, %v1241
        %v1243 = vpop.f32.mrb[0].mxu0
        %v1244 = vadd.f32 %v1143, %v1243
        %1245 = vmatprep.mubr.bf16.mxu0 %v547
        %1246 = vmatmul.mubr.bf16.gmra.mrb[0].mxu0 %v546
        %v1247 = vpop.f32.mrb[0].mxu0
        %v1248 = vadd.f32 %v1147, %v1247
        %v1249 = vpop.f32.mrb[0].mxu0
        %v1250 = vadd.f32 %v1149, %v1249
        %v1251 = vpop.f32.mrb[0].mxu0
        %v1252 = vadd.f32 %v1151, %v1251
        %v1253 = vpop.f32.mrb[0].mxu0
        %v1254 = vadd.f32 %v1153, %v1253
        %1255 = vmatprep.mubr.bf16.mxu0 %v553
        %1256 = vmatmul.mubr.bf16.gmra.mrb[0].mxu0 %v552
        %v1257 = vpop.f32.mrb[0].mxu0
        %v1258 = vadd.f32 %v1157, %v1257
        %v1259 = vpop.f32.mrb[0].mxu0
        %v1260 = vadd.f32 %v1159, %v1259
        %v1261 = vpop.f32.mrb[0].mxu0
        %v1262 = vadd.f32 %v1161, %v1261
        %v1263 = vpop.f32.mrb[0].mxu0
        %v1264 = vadd.f32 %v1163, %v1263
        %1265 = vmatprep.mubr.bf16.mxu0 %v559
        %1266 = vmatmul.mubr.bf16.gmra.mrb[0].mxu0 %v558
        %v1267 = vpop.f32.mrb[0].mxu0
        %v1268 = vadd.f32 %v1167, %v1267
        %v1269 = vpop.f32.mrb[0].mxu0
        %v1270 = vadd.f32 %v1169, %v1269
        %v1271 = vpop.f32.mrb[0].mxu0
        %v1272 = vadd.f32 %v1171, %v1271
        %v1273 = vpop.f32.mrb[0].mxu0
        %v1274 = vadd.f32 %v1173, %v1273
        %1275 = vmatprep.mubr.bf16.mxu0 %v565
        %1276 = vmatmul.mubr.bf16.gmra.mrb[0].mxu0 %v564
        %v1277 = vpop.f32.mrb[0].mxu0
        %v1278 = vadd.f32 %v1177, %v1277
        %v1279 = vpop.f32.mrb[0].mxu0
        %v1280 = vadd.f32 %v1179, %v1279
        %v1281 = vpop.f32.mrb[0].mxu0
        %v1282 = vadd.f32 %v1181, %v1281
        %v1283 = vpop.f32.mrb[0].mxu0
        %v1284 = vadd.f32 %v1183, %v1283
        %1285 = vmatprep.mubr.bf16.mxu0 %v571
        %1286 = vmatmul.mubr.bf16.gmra.mrb[0].mxu0 %v570
        %v1287 = vpop.f32.mrb[0].mxu0
        %v1288 = vadd.f32 %v1187, %v1287
        %v1289 = vpop.f32.mrb[0].mxu0
        %v1290 = vadd.f32 %v1189, %v1289
        %v1291 = vpop.f32.mrb[0].mxu0
        %v1292 = vadd.f32 %v1191, %v1291
        %v1293 = vpop.f32.mrb[0].mxu0
        %v1294 = vadd.f32 %v1193, %v1293
        %1295 = vmatprep.mubr.bf16.mxu0 %v577
        %1296 = vmatmul.mubr.bf16.gmra.mrb[0].mxu0 %v576
        %v1297 = vpop.f32.mrb[0].mxu0
        %v1298 = vadd.f32 %v1197, %v1297
        %v1299 = vpop.f32.mrb[0].mxu0
        %v1300 = vadd.f32 %v1199, %v1299
        %v1301 = vpop.f32.mrb[0].mxu0
        %v1302 = vpop.f32.mrb[0].mxu0
        %1303 = vdwg.mxu0
        %1304 = vmatprep.subr.bf16.mxu0 %v975
        %1305 = vmatpush1.bf16.msra.mxu0 %v974
        %1306 = vmatprep.subr.bf16.mxu0 %v977
        %1307 = vmatpush1.bf16.msra.mxu0 %v976
        %1308 = vmatprep.subr.bf16.mxu0 %v979
        %1309 = vmatpush1.bf16.msra.mxu0 %v978
        %1310 = vmatprep.subr.bf16.mxu0 %v981
        %1311 = vmatpush1.bf16.msra.mxu0 %v980
        %1312 = vmatprep.subr.bf16.mxu0 %v983
        %1313 = vmatpush1.bf16.msra.mxu0 %v982
        %1314 = vmatprep.subr.bf16.mxu0 %v985
        %1315 = vmatpush1.bf16.msra.mxu0 %v984
        %1316 = vmatprep.subr.bf16.mxu0 %v987
        %1317 = vmatpush1.bf16.msra.mxu0 %v986
        %1318 = vmatprep.subr.bf16.mxu0 %v989
        %1319 = vmatpush1.bf16.msra.mxu0 %v988
        %1320 = vmatprep.subr.bf16.mxu0 %v991
        %1321 = vmatpush1.bf16.msra.mxu0 %v990
        %1322 = vmatprep.subr.bf16.mxu0 %v993
        %1323 = vmatpush1.bf16.msra.mxu0 %v992
        %1324 = vmatprep.subr.bf16.mxu0 %v995
        %1325 = vmatpush1.bf16.msra.mxu0 %v994
        %1326 = vmatprep.subr.bf16.mxu0 %v997
        %1327 = vmatpush1.bf16.msra.mxu0 %v996
        %1328 = vmatprep.subr.bf16.mxu0 %v999
        %1329 = vmatpush1.bf16.msra.mxu0 %v998
        %1330 = vmatprep.subr.bf16.mxu0 %v1001
        %1331 = vmatpush1.bf16.msra.mxu0 %v1000
        %1332 = vmatprep.subr.bf16.mxu0 %v1003
        %1333 = vmatpush1.bf16.msra.mxu0 %v1002
        %1334 = vmatprep.subr.bf16.mxu0 %v1005
        %1335 = vmatpush1.bf16.msra.mxu0 %v1004
        %1336 = vmatprep.mubr.bf16.mxu0 %v543
        %1337 = vmatmul.mubr.bf16.gmra.mrb[0].mxu0 %v542
        %v1338 = vpop.f32.mrb[0].mxu0
        %v1339 = vadd.f32 %v1238, %v1338
        %v1340 = vpop.f32.mrb[0].mxu0
        %v1341 = vadd.f32 %v1240, %v1340
        %v1342 = vpop.f32.mrb[0].mxu0
        %v1343 = vadd.f32 %v1242, %v1342
        %v1344 = vpop.f32.mrb[0].mxu0
        %v1345 = vadd.f32 %v1244, %v1344
        %1346 = vmatprep.mubr.bf16.mxu0 %v549
        %1347 = vmatmul.mubr.bf16.gmra.mrb[0].mxu0 %v548
        %v1348 = vpop.f32.mrb[0].mxu0
        %v1349 = vadd.f32 %v1248, %v1348
        %v1350 = vpop.f32.mrb[0].mxu0
        %v1351 = vadd.f32 %v1250, %v1350
        %v1352 = vpop.f32.mrb[0].mxu0
        %v1353 = vadd.f32 %v1252, %v1352
        %v1354 = vpop.f32.mrb[0].mxu0
        %v1355 = vadd.f32 %v1254, %v1354
        %1356 = vmatprep.mubr.bf16.mxu0 %v555
        %1357 = vmatmul.mubr.bf16.gmra.mrb[0].mxu0 %v554
        %v1358 = vpop.f32.mrb[0].mxu0
        %v1359 = vadd.f32 %v1258, %v1358
        %v1360 = vpop.f32.mrb[0].mxu0
        %v1361 = vadd.f32 %v1260, %v1360
        %v1362 = vpop.f32.mrb[0].mxu0
        %v1363 = vadd.f32 %v1262, %v1362
        %v1364 = vpop.f32.mrb[0].mxu0
        %v1365 = vadd.f32 %v1264, %v1364
        %1366 = vmatprep.mubr.bf16.mxu0 %v561
        %1367 = vmatmul.mubr.bf16.gmra.mrb[0].mxu0 %v560
        %v1368 = vpop.f32.mrb[0].mxu0
        %v1369 = vadd.f32 %v1268, %v1368
        %v1370 = vpop.f32.mrb[0].mxu0
        %v1371 = vadd.f32 %v1270, %v1370
        %v1372 = vpop.f32.mrb[0].mxu0
        %v1373 = vadd.f32 %v1272, %v1372
        %v1374 = vpop.f32.mrb[0].mxu0
        %v1375 = vadd.f32 %v1274, %v1374
        %1376 = vmatprep.mubr.bf16.mxu0 %v567
        %1377 = vmatmul.mubr.bf16.gmra.mrb[0].mxu0 %v566
        %v1378 = vpop.f32.mrb[0].mxu0
        %v1379 = vadd.f32 %v1278, %v1378
        %v1380 = vpop.f32.mrb[0].mxu0
        %v1381 = vadd.f32 %v1280, %v1380
        %v1382 = vpop.f32.mrb[0].mxu0
        %v1383 = vadd.f32 %v1282, %v1382
        %v1384 = vpop.f32.mrb[0].mxu0
        %v1385 = vadd.f32 %v1284, %v1384
        %1386 = vmatprep.mubr.bf16.mxu0 %v573
        %1387 = vmatmul.mubr.bf16.gmra.mrb[0].mxu0 %v572
        %v1388 = vpop.f32.mrb[0].mxu0
        %v1389 = vadd.f32 %v1288, %v1388
        %v1390 = vpop.f32.mrb[0].mxu0
        %v1391 = vadd.f32 %v1290, %v1390
        %v1392 = vpop.f32.mrb[0].mxu0
        %v1393 = vadd.f32 %v1292, %v1392
        %v1394 = vpop.f32.mrb[0].mxu0
        %v1395 = vadd.f32 %v1294, %v1394
        %1396 = vmatprep.mubr.bf16.mxu0 %v579
        %1397 = vmatmul.mubr.bf16.gmra.mrb[0].mxu0 %v578
        %v1398 = vpop.f32.mrb[0].mxu0
        %v1399 = vadd.f32 %v1298, %v1398
        %v1400 = vpop.f32.mrb[0].mxu0
        %v1401 = vadd.f32 %v1300, %v1400
        %v1402 = vpop.f32.mrb[0].mxu0
        %v1403 = vpop.f32.mrb[0].mxu0
        %1404 = vdwg.mxu0
        %v1405 = vmax.f32 %v1339, 0.0
        %v1406 = vmax.f32 %v1341, 0.0
        %v1407 = vmax.f32 %v1343, 0.0
        %v1408 = vmax.f32 %v1345, 0.0
        %v1409 = vmax.f32 %v1349, 0.0
        %v1410 = vmax.f32 %v1351, 0.0
        %v1411 = vmax.f32 %v1353, 0.0
        %v1412 = vmax.f32 %v1355, 0.0
        %v1413 = vmax.f32 %v1359, 0.0
        %v1414 = vmax.f32 %v1361, 0.0
        %v1415 = vmax.f32 %v1363, 0.0
        %v1416 = vmax.f32 %v1365, 0.0
        %v1417 = vmax.f32 %v1369, 0.0
        %v1418 = vmax.f32 %v1371, 0.0
        %v1419 = vmax.f32 %v1373, 0.0
        %v1420 = vmax.f32 %v1375, 0.0
        %v1421 = vmax.f32 %v1379, 0.0
        %v1422 = vmax.f32 %v1381, 0.0
        %v1423 = vmax.f32 %v1383, 0.0
        %v1424 = vmax.f32 %v1385, 0.0
        %v1425 = vmax.f32 %v1389, 0.0
        %v1426 = vmax.f32 %v1391, 0.0
        %v1427 = vmax.f32 %v1393, 0.0
        %v1428 = vmax.f32 %v1395, 0.0
        %v1429 = vmax.f32 %v1399, 0.0
        %v1430 = vmax.f32 %v1401, 0.0
        %v1431 = vadd.f32 %v1405, %v1406
        %1432 = vadd.xlane.f32.xlu0 %v1431
        %v1433 = vpop.xlane.xlu0 %1432
        %v1434 = vadd.f32 %v1407, %v1408
        %1435 = vadd.xlane.f32.xlu0 %v1434
        %v1436 = vpop.xlane.xlu0 %1435
        %v1437 = vadd.f32 %v1409, %v1410
        %1438 = vadd.xlane.f32.xlu0 %v1437
        %v1439 = vpop.xlane.xlu0 %1438
        %v1440 = vadd.f32 %v1411, %v1412
        %1441 = vadd.xlane.f32.xlu0 %v1440
        %v1442 = vpop.xlane.xlu0 %1441
        %v1443 = vadd.f32 %v1413, %v1414
        %1444 = vadd.xlane.f32.xlu0 %v1443
        %v1445 = vpop.xlane.xlu0 %1444
        %v1446 = vadd.f32 %v1415, %v1416
        %1447 = vadd.xlane.f32.xlu0 %v1446
        %v1448 = vpop.xlane.xlu0 %1447
        %v1449 = vadd.f32 %v1417, %v1418
        %1450 = vadd.xlane.f32.xlu0 %v1449
        %v1451 = vpop.xlane.xlu0 %1450
        %v1452 = vadd.f32 %v1419, %v1420
        %1453 = vadd.xlane.f32.xlu0 %v1452
        %v1454 = vpop.xlane.xlu0 %1453
        %v1455 = vadd.f32 %v1421, %v1422
        %1456 = vadd.xlane.f32.xlu0 %v1455
        %v1457 = vpop.xlane.xlu0 %1456
        %v1458 = vadd.f32 %v1423, %v1424
        %1459 = vadd.xlane.f32.xlu0 %v1458
        %v1460 = vpop.xlane.xlu0 %1459
        %v1461 = vadd.f32 %v1425, %v1426
        %1462 = vadd.xlane.f32.xlu0 %v1461
        %v1463 = vpop.xlane.xlu0 %1462
        %v1464 = vadd.f32 %v1427, %v1428
        %1465 = vadd.xlane.f32.xlu0 %v1464
        %v1466 = vpop.xlane.xlu0 %1465
        %v1467 = vadd.f32 %v1429, %v1430
        %1468 = vadd.xlane.f32.xlu0 %v1467
        %v1469 = vpop.xlane.xlu0 %1468
        %v1470 = vrcp.pop 256.0
        %v1471 = vmul.f32 %v1433, %v1470
        %v1472 = vmul.f32 %v1436, %v1470
        %v1473 = vmul.f32 %v1439, %v1470
        %v1474 = vmul.f32 %v1442, %v1470
        %v1475 = vmul.f32 %v1445, %v1470
        %v1476 = vmul.f32 %v1448, %v1470
        %v1477 = vmul.f32 %v1451, %v1470
        %v1478 = vmul.f32 %v1454, %v1470
        %v1479 = vmul.f32 %v1457, %v1470
        %v1480 = vmul.f32 %v1460, %v1470
        %v1481 = vmul.f32 %v1463, %v1470
        %v1482 = vmul.f32 %v1466, %v1470
        %v1483 = vmul.f32 %v1469, %v1470
        %v1484 = vmul.f32 %v1405, %v1405
        %v1485 = vmul.f32 %v1406, %v1406
        %v1486 = vmul.f32 %v1407, %v1407
        %v1487 = vmul.f32 %v1408, %v1408
        %v1488 = vmul.f32 %v1409, %v1409
        %v1489 = vmul.f32 %v1410, %v1410
        %v1490 = vmul.f32 %v1411, %v1411
        %v1491 = vmul.f32 %v1412, %v1412
        %v1492 = vmul.f32 %v1413, %v1413
        %v1493 = vmul.f32 %v1414, %v1414
        %v1494 = vmul.f32 %v1415, %v1415
        %v1495 = vmul.f32 %v1416, %v1416
        %v1496 = vmul.f32 %v1417, %v1417
        %v1497 = vmul.f32 %v1418, %v1418
        %v1498 = vmul.f32 %v1419, %v1419
        %v1499 = vmul.f32 %v1420, %v1420
        %v1500 = vmul.f32 %v1421, %v1421
        %v1501 = vmul.f32 %v1422, %v1422
        %v1502 = vmul.f32 %v1423, %v1423
        %v1503 = vmul.f32 %v1424, %v1424
        %v1504 = vmul.f32 %v1425, %v1425
        %v1505 = vmul.f32 %v1426, %v1426
        %v1506 = vmul.f32 %v1427, %v1427
        %v1507 = vmul.f32 %v1428, %v1428
        %v1508 = vmul.f32 %v1429, %v1429
        %v1509 = vmul.f32 %v1430, %v1430
        %v1510 = vadd.f32 %v1484, %v1485
        %1511 = vadd.xlane.f32.xlu0 %v1510
        %v1512 = vpop.xlane.xlu0 %1511
        %v1513 = vadd.f32 %v1486, %v1487
        %1514 = vadd.xlane.f32.xlu0 %v1513
        %v1515 = vpop.xlane.xlu0 %1514
        %v1516 = vadd.f32 %v1488, %v1489
        %1517 = vadd.xlane.f32.xlu0 %v1516
        %v1518 = vpop.xlane.xlu0 %1517
        %v1519 = vadd.f32 %v1490, %v1491
        %1520 = vadd.xlane.f32.xlu0 %v1519
        %v1521 = vpop.xlane.xlu0 %1520
        %v1522 = vadd.f32 %v1492, %v1493
        %1523 = vadd.xlane.f32.xlu0 %v1522
        %v1524 = vpop.xlane.xlu0 %1523
        %v1525 = vadd.f32 %v1494, %v1495
        %1526 = vadd.xlane.f32.xlu0 %v1525
        %v1527 = vpop.xlane.xlu0 %1526
        %v1528 = vadd.f32 %v1496, %v1497
        %1529 = vadd.xlane.f32.xlu0 %v1528
        %v1530 = vpop.xlane.xlu0 %1529
        %v1531 = vadd.f32 %v1498, %v1499
        %1532 = vadd.xlane.f32.xlu0 %v1531
        %v1533 = vpop.xlane.xlu0 %1532
        %v1534 = vadd.f32 %v1500, %v1501
        %1535 = vadd.xlane.f32.xlu0 %v1534
        %v1536 = vpop.xlane.xlu0 %1535
        %v1537 = vadd.f32 %v1502, %v1503
        %1538 = vadd.xlane.f32.xlu0 %v1537
        %v1539 = vpop.xlane.xlu0 %1538
        %v1540 = vadd.f32 %v1504, %v1505
        %1541 = vadd.xlane.f32.xlu0 %v1540
        %v1542 = vpop.xlane.xlu0 %1541
        %v1543 = vadd.f32 %v1506, %v1507
        %1544 = vadd.xlane.f32.xlu0 %v1543
        %v1545 = vpop.xlane.xlu0 %1544
        %v1546 = vadd.f32 %v1508, %v1509
        %1547 = vadd.xlane.f32.xlu0 %v1546
        %v1548 = vpop.xlane.xlu0 %1547
        %v1549 = vmul.f32 %v1512, %v1470
        %v1550 = vmul.f32 %v1515, %v1470
        %v1551 = vmul.f32 %v1518, %v1470
        %v1552 = vmul.f32 %v1521, %v1470
        %v1553 = vmul.f32 %v1524, %v1470
        %v1554 = vmul.f32 %v1527, %v1470
        %v1555 = vmul.f32 %v1530, %v1470
        %v1556 = vmul.f32 %v1533, %v1470
        %v1557 = vmul.f32 %v1536, %v1470
        %v1558 = vmul.f32 %v1539, %v1470
        %v1559 = vmul.f32 %v1542, %v1470
        %v1560 = vmul.f32 %v1545, %v1470
        %v1561 = vmul.f32 %v1548, %v1470
        %v1562 = vmul.f32 %v1471, %v1471
        %v1563 = vmul.f32 %v1472, %v1472
        %v1564 = vmul.f32 %v1473, %v1473
        %v1565 = vmul.f32 %v1474, %v1474
        %v1566 = vmul.f32 %v1475, %v1475
        %v1567 = vmul.f32 %v1476, %v1476
        %v1568 = vmul.f32 %v1477, %v1477
        %v1569 = vmul.f32 %v1478, %v1478
        %v1570 = vmul.f32 %v1479, %v1479
        %v1571 = vmul.f32 %v1480, %v1480
        %v1572 = vmul.f32 %v1481, %v1481
        %v1573 = vmul.f32 %v1482, %v1482
        %v1574 = vmul.f32 %v1483, %v1483
        %v1575 = vsub.f32 %v1549, %v1562
        %v1576 = vsub.f32 %v1550, %v1563
        %v1577 = vsub.f32 %v1551, %v1564
        %v1578 = vsub.f32 %v1552, %v1565
        %v1579 = vsub.f32 %v1553, %v1566
        %v1580 = vsub.f32 %v1554, %v1567
        %v1581 = vsub.f32 %v1555, %v1568
        %v1582 = vsub.f32 %v1556, %v1569
        %v1583 = vsub.f32 %v1557, %v1570
        %v1584 = vsub.f32 %v1558, %v1571
        %v1585 = vsub.f32 %v1559, %v1572
        %v1586 = vsub.f32 %v1560, %v1573
        %v1587 = vsub.f32 %v1561, %v1574
        %v1588 = vmax.f32 %v1575, 0.0
        %v1589 = vmax.f32 %v1576, 0.0
        %v1590 = vmax.f32 %v1577, 0.0
        %v1591 = vmax.f32 %v1578, 0.0
        %v1592 = vmax.f32 %v1579, 0.0
        %v1593 = vmax.f32 %v1580, 0.0
        %v1594 = vmax.f32 %v1581, 0.0
        %v1595 = vmax.f32 %v1582, 0.0
        %v1596 = vmax.f32 %v1583, 0.0
        %v1597 = vmax.f32 %v1584, 0.0
        %v1598 = vmax.f32 %v1585, 0.0
        %v1599 = vmax.f32 %v1586, 0.0
        %v1600 = vmax.f32 %v1587, 0.0
        %v1601 = vsub.f32 %v1405, %v1471
        %v1602 = vsub.f32 %v1406, %v1471
        %v1603 = vsub.f32 %v1407, %v1472
        %v1604 = vsub.f32 %v1408, %v1472
        %v1605 = vsub.f32 %v1409, %v1473
        %v1606 = vsub.f32 %v1410, %v1473
        %v1607 = vsub.f32 %v1411, %v1474
        %v1608 = vsub.f32 %v1412, %v1474
        %v1609 = vsub.f32 %v1413, %v1475
        %v1610 = vsub.f32 %v1414, %v1475
        %v1611 = vsub.f32 %v1415, %v1476
        %v1612 = vsub.f32 %v1416, %v1476
        %v1613 = vsub.f32 %v1417, %v1477
        %v1614 = vsub.f32 %v1418, %v1477
        %v1615 = vsub.f32 %v1419, %v1478
        %v1616 = vsub.f32 %v1420, %v1478
        %v1617 = vsub.f32 %v1421, %v1479
        %v1618 = vsub.f32 %v1422, %v1479
        %v1619 = vsub.f32 %v1423, %v1480
        %v1620 = vsub.f32 %v1424, %v1480
        %v1621 = vsub.f32 %v1425, %v1481
        %v1622 = vsub.f32 %v1426, %v1481
        %v1623 = vsub.f32 %v1427, %v1482
        %v1624 = vsub.f32 %v1428, %v1482
        %v1625 = vsub.f32 %v1429, %v1483
        %v1626 = vsub.f32 %v1430, %v1483
        %v1627 = vadd.f32 %v1588, 1e-05
        %v1628 = vadd.f32 %v1589, 1e-05
        %v1629 = vadd.f32 %v1590, 1e-05
        %v1630 = vadd.f32 %v1591, 1e-05
        %v1631 = vadd.f32 %v1592, 1e-05
        %v1632 = vadd.f32 %v1593, 1e-05
        %v1633 = vadd.f32 %v1594, 1e-05
        %v1634 = vadd.f32 %v1595, 1e-05
        %v1635 = vadd.f32 %v1596, 1e-05
        %v1636 = vadd.f32 %v1597, 1e-05
        %v1637 = vadd.f32 %v1598, 1e-05
        %v1638 = vadd.f32 %v1599, 1e-05
        %v1639 = vadd.f32 %v1600, 1e-05
        %v1640 = vrsqrt.pop %v1627
        %v1641 = vrsqrt.pop %v1628
        %v1642 = vrsqrt.pop %v1629
        %v1643 = vrsqrt.pop %v1630
        %v1644 = vrsqrt.pop %v1631
        %v1645 = vrsqrt.pop %v1632
        %v1646 = vrsqrt.pop %v1633
        %v1647 = vrsqrt.pop %v1634
        %v1648 = vrsqrt.pop %v1635
        %v1649 = vrsqrt.pop %v1636
        %v1650 = vrsqrt.pop %v1637
        %v1651 = vrsqrt.pop %v1638
        %v1652 = vrsqrt.pop %v1639
        %v1653 = vmul.f32 %v1601, %v1640
        %v1654 = vmul.f32 %v1602, %v1640
        %v1655 = vmul.f32 %v1603, %v1641
        %v1656 = vmul.f32 %v1604, %v1641
        %v1657 = vmul.f32 %v1605, %v1642
        %v1658 = vmul.f32 %v1606, %v1642
        %v1659 = vmul.f32 %v1607, %v1643
        %v1660 = vmul.f32 %v1608, %v1643
        %v1661 = vmul.f32 %v1609, %v1644
        %v1662 = vmul.f32 %v1610, %v1644
        %v1663 = vmul.f32 %v1611, %v1645
        %v1664 = vmul.f32 %v1612, %v1645
        %v1665 = vmul.f32 %v1613, %v1646
        %v1666 = vmul.f32 %v1614, %v1646
        %v1667 = vmul.f32 %v1615, %v1647
        %v1668 = vmul.f32 %v1616, %v1647
        %v1669 = vmul.f32 %v1617, %v1648
        %v1670 = vmul.f32 %v1618, %v1648
        %v1671 = vmul.f32 %v1619, %v1649
        %v1672 = vmul.f32 %v1620, %v1649
        %v1673 = vmul.f32 %v1621, %v1650
        %v1674 = vmul.f32 %v1622, %v1650
        %v1675 = vmul.f32 %v1623, %v1651
        %v1676 = vmul.f32 %v1624, %v1651
        %v1677 = vmul.f32 %v1625, %v1652
        %v1678 = vmul.f32 %v1626, %v1652
        %v1679 = vpack.c.bf16 %v1655, %v1653
        %v1680 = vpack.c.bf16 %v1656, %v1654
        %v1681 = vpack.c.bf16 %v1659, %v1657
        %v1682 = vpack.c.bf16 %v1660, %v1658
        %v1683 = vpack.c.bf16 %v1663, %v1661
        %v1684 = vpack.c.bf16 %v1664, %v1662
        %v1685 = vpack.c.bf16 %v1667, %v1665
        %v1686 = vpack.c.bf16 %v1668, %v1666
        %v1687 = vpack.c.bf16 %v1671, %v1669
        %v1688 = vpack.c.bf16 %v1672, %v1670
        %v1689 = vpack.c.bf16 %v1675, %v1673
        %v1690 = vpack.c.bf16 %v1676, %v1674
        %v1691 = vpack.c.bf16 %v1677, %v1677
        %v1692 = vpack.c.bf16 %v1678, %v1678
        %v1693 = vld [vmem:[%s3] sm:$0xf]
        %v1694 = vld [vmem:[%s3 + $0x4] sm:$0xf]
        %v1695 = vld [vmem:[%s3 + $0x8] sm:$0xf]
        %v1696 = vld [vmem:[%s3 + $0xc] sm:$0xf]
        %v1697 = vld [vmem:[%s3 + $0x10] sm:$0xf]
        %v1698 = vld [vmem:[%s3 + $0x14] sm:$0xf]
        %v1699 = vld [vmem:[%s3 + $0x18] sm:$0xf]
        %v1700 = vld [vmem:[%s3 + $0x1c] sm:$0xf]
        %v1701 = vld [vmem:[%s3 + $0x20] sm:$0xf]
        %v1702 = vld [vmem:[%s3 + $0x24] sm:$0xf]
        %v1703 = vld [vmem:[%s3 + $0x28] sm:$0xf]
        %v1704 = vld [vmem:[%s3 + $0x2c] sm:$0xf]
        %v1705 = vld [vmem:[%s3 + $0x30] sm:$0xf]
        %v1706 = vld [vmem:[%s3 + $0x34] sm:$0xf]
        %v1707 = vld [vmem:[%s3 + $0x38] sm:$0xf]
        %v1708 = vld [vmem:[%s3 + $0x3c] sm:$0xf]
        %v1709 = vld [vmem:[%s3 + $0x40] sm:$0xf]
        %v1710 = vld [vmem:[%s3 + $0x44] sm:$0xf]
        %v1711 = vld [vmem:[%s3 + $0x48] sm:$0xf]
        %v1712 = vld [vmem:[%s3 + $0x4c] sm:$0xf]
        %v1713 = vld [vmem:[%s3 + $0x50] sm:$0xf]
        %v1714 = vld [vmem:[%s3 + $0x54] sm:$0xf]
        %v1715 = vld [vmem:[%s3 + $0x58] sm:$0xf]
        %v1716 = vld [vmem:[%s3 + $0x5c] sm:$0xf]
        %v1717 = vld [vmem:[%s3 + $0x60] sm:$0xf]
        %v1718 = vld [vmem:[%s3 + $0x64] sm:$0xf]
        %v1719 = vld [vmem:[%s3 + $0x68] sm:$0xf]
        %v1720 = vld [vmem:[%s3 + $0x6c] sm:$0xf]
        %v1721 = vld [vmem:[%s3 + $0x70] sm:$0xf]
        %v1722 = vld [vmem:[%s3 + $0x74] sm:$0xf]
        %v1723 = vld [vmem:[%s3 + $0x78] sm:$0xf]
        %v1724 = vld [vmem:[%s3 + $0x7c] sm:$0xf]
        %v1725 = vld [vmem:[%s4] sm:$0x1]
        %v1727 = vlaneseq
        %v1728 = vshrl.u32 %v1727, 7
        %v1729 = vsub.s32 0, %v1728
        %v1730 = vrot.slane %v1725, %v1729
        %v1764 = vunpack.c.l.b16 %v1693
        %v1765 = vunpack.c.l.b16 %v1694
        %v1766 = vunpack.c.l.b16 %v1695
        %v1767 = vunpack.c.l.b16 %v1696
        %v1768 = vunpack.c.l.b16 %v1697
        %v1769 = vunpack.c.l.b16 %v1698
        %v1770 = vunpack.c.l.b16 %v1699
        %v1771 = vunpack.c.l.b16 %v1700
        %v1772 = vunpack.c.l.b16 %v1701
        %v1773 = vunpack.c.l.b16 %v1702
        %v1774 = vunpack.c.l.b16 %v1703
        %v1775 = vunpack.c.l.b16 %v1704
        %v1776 = vunpack.c.l.b16 %v1705
        %v1777 = vunpack.c.l.b16 %v1706
        %v1778 = vunpack.c.l.b16 %v1707
        %v1779 = vunpack.c.l.b16 %v1708
        %v1780 = vunpack.c.l.b16 %v1709
        %v1781 = vunpack.c.l.b16 %v1710
        %v1782 = vunpack.c.l.b16 %v1711
        %v1783 = vunpack.c.l.b16 %v1712
        %v1784 = vunpack.c.l.b16 %v1713
        %v1785 = vunpack.c.l.b16 %v1714
        %v1786 = vunpack.c.l.b16 %v1715
        %v1787 = vunpack.c.l.b16 %v1716
        %v1788 = vunpack.c.l.b16 %v1717
        %v1789 = vunpack.c.l.b16 %v1718
        %v1790 = vunpack.c.l.b16 %v1719
        %v1791 = vunpack.c.l.b16 %v1720
        %v1792 = vunpack.c.l.b16 %v1721
        %v1793 = vunpack.c.l.b16 %v1722
        %v1794 = vunpack.c.l.b16 %v1723
        %v1795 = vunpack.c.l.b16 %v1724
        %v1796 = vpack.c.b16 %v1765, %v1764
        %v1797 = vpack.c.b16 %v1767, %v1766
        %v1798 = vpack.c.b16 %v1769, %v1768
        %v1799 = vpack.c.b16 %v1771, %v1770
        %v1800 = vpack.c.b16 %v1773, %v1772
        %v1801 = vpack.c.b16 %v1775, %v1774
        %v1802 = vpack.c.b16 %v1777, %v1776
        %v1803 = vpack.c.b16 %v1779, %v1778
        %v1804 = vpack.c.b16 %v1781, %v1780
        %v1805 = vpack.c.b16 %v1783, %v1782
        %v1806 = vpack.c.b16 %v1785, %v1784
        %v1807 = vpack.c.b16 %v1787, %v1786
        %v1808 = vpack.c.b16 %v1789, %v1788
        %v1809 = vpack.c.b16 %v1791, %v1790
        %v1810 = vpack.c.b16 %v1793, %v1792
        %v1811 = vpack.c.b16 %v1795, %v1794
        %1828 = vmatprep.subr.bf16.mxu0 0
        %1829 = vmatpush1.bf16.msra.mxu0 %v1796
        %1830 = vmatprep.subr.bf16.mxu0 0
        %1831 = vmatpush1.bf16.msra.mxu0 %v1797
        %1832 = vmatprep.subr.bf16.mxu0 0
        %1833 = vmatpush1.bf16.msra.mxu0 %v1798
        %1834 = vmatprep.subr.bf16.mxu0 0
        %1835 = vmatpush1.bf16.msra.mxu0 %v1799
        %1836 = vmatprep.subr.bf16.mxu0 0
        %1837 = vmatpush1.bf16.msra.mxu0 %v1800
        %1838 = vmatprep.subr.bf16.mxu0 0
        %1839 = vmatpush1.bf16.msra.mxu0 %v1801
        %1840 = vmatprep.subr.bf16.mxu0 0
        %1841 = vmatpush1.bf16.msra.mxu0 %v1802
        %1842 = vmatprep.subr.bf16.mxu0 0
        %1843 = vmatpush1.bf16.msra.mxu0 %v1803
        %1844 = vmatprep.subr.bf16.mxu0 0
        %1845 = vmatpush1.bf16.msra.mxu0 %v1804
        %1846 = vmatprep.subr.bf16.mxu0 0
        %1847 = vmatpush1.bf16.msra.mxu0 %v1805
        %1848 = vmatprep.subr.bf16.mxu0 0
        %1849 = vmatpush1.bf16.msra.mxu0 %v1806
        %1850 = vmatprep.subr.bf16.mxu0 0
        %1851 = vmatpush1.bf16.msra.mxu0 %v1807
        %1852 = vmatprep.subr.bf16.mxu0 0
        %1853 = vmatpush1.bf16.msra.mxu0 %v1808
        %1854 = vmatprep.subr.bf16.mxu0 0
        %1855 = vmatpush1.bf16.msra.mxu0 %v1809
        %1856 = vmatprep.subr.bf16.mxu0 0
        %1857 = vmatpush1.bf16.msra.mxu0 %v1810
        %1858 = vmatprep.subr.bf16.mxu0 0
        %1859 = vmatpush1.bf16.msra.mxu0 %v1811
        %1860 = vmatprep.mubr.bf16.mxu0 %v1680
        %1861 = vmatmul.mubr.bf16.gmra.mrb[0].mxu0 %v1679
        %v1862 = vpop.f32.mrb[0].mxu0
        %v1863 = vadd.f32 %v1730, %v1862
        %v1864 = vpop.f32.mrb[0].mxu0
        %v1865 = vpop.f32.mrb[0].mxu0
        %v1866 = vadd.f32 %v1730, %v1865
        %v1867 = vpop.f32.mrb[0].mxu0
        %1868 = vmatprep.mubr.bf16.mxu0 %v1682
        %1869 = vmatmul.mubr.bf16.gmra.mrb[0].mxu0 %v1681
        %v1870 = vpop.f32.mrb[0].mxu0
        %v1871 = vadd.f32 %v1730, %v1870
        %v1872 = vpop.f32.mrb[0].mxu0
        %v1873 = vpop.f32.mrb[0].mxu0
        %v1874 = vadd.f32 %v1730, %v1873
        %v1875 = vpop.f32.mrb[0].mxu0
        %1876 = vmatprep.mubr.bf16.mxu0 %v1684
        %1877 = vmatmul.mubr.bf16.gmra.mrb[0].mxu0 %v1683
        %v1878 = vpop.f32.mrb[0].mxu0
        %v1879 = vadd.f32 %v1730, %v1878
        %v1880 = vpop.f32.mrb[0].mxu0
        %v1881 = vpop.f32.mrb[0].mxu0
        %v1882 = vadd.f32 %v1730, %v1881
        %v1883 = vpop.f32.mrb[0].mxu0
        %1884 = vmatprep.mubr.bf16.mxu0 %v1686
        %1885 = vmatmul.mubr.bf16.gmra.mrb[0].mxu0 %v1685
        %v1886 = vpop.f32.mrb[0].mxu0
        %v1887 = vadd.f32 %v1730, %v1886
        %v1888 = vpop.f32.mrb[0].mxu0
        %v1889 = vpop.f32.mrb[0].mxu0
        %v1890 = vadd.f32 %v1730, %v1889
        %v1891 = vpop.f32.mrb[0].mxu0
        %1892 = vmatprep.mubr.bf16.mxu0 %v1688
        %1893 = vmatmul.mubr.bf16.gmra.mrb[0].mxu0 %v1687
        %v1894 = vpop.f32.mrb[0].mxu0
        %v1895 = vadd.f32 %v1730, %v1894
        %v1896 = vpop.f32.mrb[0].mxu0
        %v1897 = vpop.f32.mrb[0].mxu0
        %v1898 = vadd.f32 %v1730, %v1897
        %v1899 = vpop.f32.mrb[0].mxu0
        %1900 = vmatprep.mubr.bf16.mxu0 %v1690
        %1901 = vmatmul.mubr.bf16.gmra.mrb[0].mxu0 %v1689
        %v1902 = vpop.f32.mrb[0].mxu0
        %v1903 = vadd.f32 %v1730, %v1902
        %v1904 = vpop.f32.mrb[0].mxu0
        %v1905 = vpop.f32.mrb[0].mxu0
        %v1906 = vadd.f32 %v1730, %v1905
        %v1907 = vpop.f32.mrb[0].mxu0
        %1908 = vmatprep.mubr.bf16.mxu0 %v1692
        %1909 = vmatmul.mubr.bf16.gmra.mrb[0].mxu0 %v1691
        %v1910 = vpop.f32.mrb[0].mxu0
        %v1911 = vadd.f32 %v1730, %v1910
        %v1912 = vpop.f32.mrb[0].mxu0
        %v1913 = vpop.f32.mrb[0].mxu0
        %v1914 = vpop.f32.mrb[0].mxu0
        %1915 = vdwg.mxu0
        %vm1916 = vcmask 523264
        %1917 = vst.msk [vmem:[%s261] sm:$0xff] %vm1916, %v1863
        %1918 = vst.msk [vmem:[%s261 + $0x8] sm:$0xff] %vm1916, %v1866
        %1919 = vst.msk [vmem:[%s261 + $0x10] sm:$0xff] %vm1916, %v1871
        %1920 = vst.msk [vmem:[%s261 + $0x18] sm:$0xff] %vm1916, %v1874
        %1921 = vst.msk [vmem:[%s261 + $0x20] sm:$0xff] %vm1916, %v1879
        %1922 = vst.msk [vmem:[%s261 + $0x28] sm:$0xff] %vm1916, %v1882
        %1923 = vst.msk [vmem:[%s261 + $0x30] sm:$0xff] %vm1916, %v1887
        %1924 = vst.msk [vmem:[%s261 + $0x38] sm:$0xff] %vm1916, %v1890
        %1925 = vst.msk [vmem:[%s261 + $0x40] sm:$0xff] %vm1916, %v1895
        %1926 = vst.msk [vmem:[%s261 + $0x48] sm:$0xff] %vm1916, %v1898
        %1927 = vst.msk [vmem:[%s261 + $0x50] sm:$0xff] %vm1916, %v1903
        %1928 = vst.msk [vmem:[%s261 + $0x58] sm:$0xff] %vm1916, %v1906
        %1929 = vst.msk [vmem:[%s261 + $0x60] sm:$0xff] %vm1916, %v1911
        %s1930 = sand.u32 %s138, 1
        %s1931 = sand.u32 %s138, 1
        %s1932 = smul.addr %s1931, 104
        %s1933 = scalar_lea.vmem [#allocation6], %s1932
        // Predicated region
        $region49: #{tpu_custom_call.1} parent=39 // pred_check
          %p1934 = pneg %p148
        $region50: #{tpu_custom_call.1} parent=39 // pred_check_branch
          %1936 = sbr.rel (%p1934) target = $region52
        $region51: #{tpu_custom_call.1} parent=39 // pred_region
          %s1937 = smul.u32 13, %s20
          %s1938 = ssub.s32 25, %s1937
          %p1939 = scmp.lt.s32.totalorder %s1938, 13
          %s1940 = scalar_select %p1939, %s1938, 13
          %s1941 = smul.u32 128, %s1940
          %p1942 = scmp.ne.s32.totalorder 0, %s1941
          %s1943 = smul.addr %s1937, 8
          %s1944 = scalar_lea.vmem %s5, %s1943
          // Predicated region
          $region53: #{tpu_custom_call.1} parent=51 // pred_check
            %p1945 = pneg %p1942
          $region54: #{tpu_custom_call.1} parent=51 // pred_check_branch
            %1947 = sbr.rel (%p1945) target = $region56
          $region55: #{tpu_custom_call.1} parent=51 // pred_region
            // Predicated region
            $region57: #{tpu_custom_call.1} parent=55 // pred_check
              _
            $region58: #{tpu_custom_call.1} parent=55 // pred_check_branch
              %1949 = sbr.rel (0) target = $region60
            $region59: #{tpu_custom_call.1} parent=55 // pred_region
              // Predicated region
              $region79: #{tpu_custom_call.1} parent=59 // pred_check
                _
              $region80: #{tpu_custom_call.1} parent=59 // pred_check_branch
                %2023 = sbr.rel (0) target = $region82
              $region81: #{tpu_custom_call.1} parent=59 // pred_region
                %s2024 = sdiv.u32.pop %s1940, 13
                %s2025 = srem.u32.pop %s1940, 13
                // While loop
                $region83: #{tpu_custom_call.1} parent=81 // loop_pre_header
                  _
                $region84: #{tpu_custom_call.1} parent=81 // loop_header
                  %s2027 = sphi 0, %s2029
                  %p2028 = scmp.ge.s32.totalorder %s2027, %s2024
                  %s2032 = sphi 0, %s2063
                  %s2033 = sphi %s1933, %s2066
                  %s2034 = sphi %s1944, %s2067
                $region85: #{tpu_custom_call.1} parent=81 // loop_header_branch
                  %2031 = sbr.rel (%p2028) target = $region89
                $region86: #{tpu_custom_call.1} parent=81 // loop_body
                  %v2035 = vld [vmem:[%s2033] sm:$0xff]
                  %2036 = vst [vmem:[%s2034] sm:$0xff] %v2035
                  %v2037 = vld [vmem:[%s2033 + $0x8] sm:$0xff]
                  %2038 = vst [vmem:[%s2034 + $0x8] sm:$0xff] %v2037
                  %v2039 = vld [vmem:[%s2033 + $0x10] sm:$0xff]
                  %2040 = vst [vmem:[%s2034 + $0x10] sm:$0xff] %v2039
                  %v2041 = vld [vmem:[%s2033 + $0x18] sm:$0xff]
                  %2042 = vst [vmem:[%s2034 + $0x18] sm:$0xff] %v2041
                  %v2043 = vld [vmem:[%s2033 + $0x20] sm:$0xff]
                  %2044 = vst [vmem:[%s2034 + $0x20] sm:$0xff] %v2043
                  %v2045 = vld [vmem:[%s2033 + $0x28] sm:$0xff]
                  %2046 = vst [vmem:[%s2034 + $0x28] sm:$0xff] %v2045
                  %v2047 = vld [vmem:[%s2033 + $0x30] sm:$0xff]
                  %2048 = vst [vmem:[%s2034 + $0x30] sm:$0xff] %v2047
                  %v2049 = vld [vmem:[%s2033 + $0x38] sm:$0xff]
                  %2050 = vst [vmem:[%s2034 + $0x38] sm:$0xff] %v2049
                  %v2051 = vld [vmem:[%s2033 + $0x40] sm:$0xff]
                  %2052 = vst [vmem:[%s2034 + $0x40] sm:$0xff] %v2051
                  %v2053 = vld [vmem:[%s2033 + $0x48] sm:$0xff]
                  %2054 = vst [vmem:[%s2034 + $0x48] sm:$0xff] %v2053
                  %v2055 = vld [vmem:[%s2033 + $0x50] sm:$0xff]
                  %2056 = vst [vmem:[%s2034 + $0x50] sm:$0xff] %v2055
                  %v2057 = vld [vmem:[%s2033 + $0x58] sm:$0xff]
                  %2058 = vst [vmem:[%s2034 + $0x58] sm:$0xff] %v2057
                  %v2059 = vld [vmem:[%s2033 + $0x60] sm:$0xff]
                  %2060 = vst [vmem:[%s2034 + $0x60] sm:$0xff] %v2059
                  %s2061 = sadd.s32 1, %s2032
                  %p2062 = scmp.ge.s32.totalorder %s2061, %s2024
                  %s2063 = scalar_select %p2062, 0, %s2061
                  %s2064 = smul.u32 %s2063, 104
                  %s2065 = smul.u32 %s2063, 104
                  %s2066 = scalar_lea.vmem %s1933, %s2064 [#allocation6]
                  %s2067 = scalar_lea.vmem %s1944, %s2065
                $region87: #{tpu_custom_call.1} parent=81 // loop_footer
                  %s2029 = sadd.s32 %s2027, 1
                $region88: #{tpu_custom_call.1} parent=81 // loop_footer_branch
                  %2026 = sbr.rel target = $region84
                $region89: #{tpu_custom_call.1} parent=81 // loop_exit
                  _
                %s2068 = sdiv.u32.pop %s1940, 13
                %s2069 = srem.u32.pop %s1940, 13
                %s2070 = smul.u32 %s2068, 13
                %s2071 = smul.u32 8, %s2070
                %s2072 = scalar_lea.vmem %s1933, %s2071 [#allocation6]
                %s2073 = smul.u32 8, %s2070
                %s2074 = scalar_lea.vmem %s1944, %s2073
                // While loop
                $region90: #{tpu_custom_call.1} parent=81 // loop_pre_header
                  _
                $region91: #{tpu_custom_call.1} parent=81 // loop_header
                  %s2076 = sphi 0, %s2078
                  %p2077 = scmp.ge.s32.totalorder %s2076, %s2069
                  %s2081 = sphi 0, %s2088
                  %s2082 = sphi %s2072, %s2091
                  %s2083 = sphi %s2074, %s2092
                $region92: #{tpu_custom_call.1} parent=81 // loop_header_branch
                  %2080 = sbr.rel (%p2077) target = $region96
                $region93: #{tpu_custom_call.1} parent=81 // loop_body
                  %v2084 = vld [vmem:[%s2082] sm:$0xff]
                  %2085 = vst [vmem:[%s2083] sm:$0xff] %v2084
                  %s2086 = sadd.s32 1, %s2081
                  %p2087 = scmp.ge.s32.totalorder %s2086, %s2069
                  %s2088 = scalar_select %p2087, 0, %s2086
                  %s2089 = smul.u32 %s2088, 8
                  %s2090 = smul.u32 %s2088, 8
                  %s2091 = scalar_lea.vmem %s2072, %s2089 [#allocation6]
                  %s2092 = scalar_lea.vmem %s2074, %s2090
                $region94: #{tpu_custom_call.1} parent=81 // loop_footer
                  %s2078 = sadd.s32 %s2076, 1
                $region95: #{tpu_custom_call.1} parent=81 // loop_footer_branch
                  %2075 = sbr.rel target = $region91
                $region96: #{tpu_custom_call.1} parent=81 // loop_exit
                  _
              $region82: #{tpu_custom_call.1} parent=59 // pred_fallthru
                _
              // Predicated region
              $region97: #{tpu_custom_call.1} parent=59 // pred_check
                _
              $region98: #{tpu_custom_call.1} parent=59 // pred_check_branch
                %2094 = sbr.rel target = $region100
              $region99: #{tpu_custom_call.1} parent=59 // pred_region
                _
              $region100: #{tpu_custom_call.1} parent=59 // pred_fallthru
                _
            $region60: #{tpu_custom_call.1} parent=55 // pred_fallthru
              _
            // Predicated region
            $region61: #{tpu_custom_call.1} parent=55 // pred_check
              _
            $region62: #{tpu_custom_call.1} parent=55 // pred_check_branch
              %1951 = sbr.rel target = $region64
            $region63: #{tpu_custom_call.1} parent=55 // pred_region
              %s1953 = sdiv.u32.pop %s1940, 13
              %s1954 = srem.u32.pop %s1940, 13
              // While loop
              $region65: #{tpu_custom_call.1} parent=63 // loop_pre_header
                _
              $region66: #{tpu_custom_call.1} parent=63 // loop_header
                %s1956 = sphi 0, %s1958
                %p1957 = scmp.ge.s32.totalorder %s1956, %s1953
                %s1961 = sphi 0, %s1992
                %s1962 = sphi %s1933, %s1995
                %s1963 = sphi %s1944, %s1996
              $region67: #{tpu_custom_call.1} parent=63 // loop_header_branch
                %1960 = sbr.rel (%p1957) target = $region71
              $region68: #{tpu_custom_call.1} parent=63 // loop_body
                %v1964 = vld [vmem:[%s1962] sm:$0xff]
                %1965 = vst [vmem:[%s1963] sm:$0xff] %v1964
                %v1966 = vld [vmem:[%s1962 + $0x8] sm:$0xff]
                %1967 = vst [vmem:[%s1963 + $0x8] sm:$0xff] %v1966
                %v1968 = vld [vmem:[%s1962 + $0x10] sm:$0xff]
                %1969 = vst [vmem:[%s1963 + $0x10] sm:$0xff] %v1968
                %v1970 = vld [vmem:[%s1962 + $0x18] sm:$0xff]
                %1971 = vst [vmem:[%s1963 + $0x18] sm:$0xff] %v1970
                %v1972 = vld [vmem:[%s1962 + $0x20] sm:$0xff]
                %1973 = vst [vmem:[%s1963 + $0x20] sm:$0xff] %v1972
                %v1974 = vld [vmem:[%s1962 + $0x28] sm:$0xff]
                %1975 = vst [vmem:[%s1963 + $0x28] sm:$0xff] %v1974
                %v1976 = vld [vmem:[%s1962 + $0x30] sm:$0xff]
                %1977 = vst [vmem:[%s1963 + $0x30] sm:$0xff] %v1976
                %v1978 = vld [vmem:[%s1962 + $0x38] sm:$0xff]
                %1979 = vst [vmem:[%s1963 + $0x38] sm:$0xff] %v1978
                %v1980 = vld [vmem:[%s1962 + $0x40] sm:$0xff]
                %1981 = vst [vmem:[%s1963 + $0x40] sm:$0xff] %v1980
                %v1982 = vld [vmem:[%s1962 + $0x48] sm:$0xff]
                %1983 = vst [vmem:[%s1963 + $0x48] sm:$0xff] %v1982
                %v1984 = vld [vmem:[%s1962 + $0x50] sm:$0xff]
                %1985 = vst [vmem:[%s1963 + $0x50] sm:$0xff] %v1984
                %v1986 = vld [vmem:[%s1962 + $0x58] sm:$0xff]
                %1987 = vst [vmem:[%s1963 + $0x58] sm:$0xff] %v1986
                %v1988 = vld [vmem:[%s1962 + $0x60] sm:$0xff]
                %1989 = vst [vmem:[%s1963 + $0x60] sm:$0xff] %v1988
                %s1990 = sadd.s32 1, %s1961
                %p1991 = scmp.ge.s32.totalorder %s1990, %s1953
                %s1992 = scalar_select %p1991, 0, %s1990
                %s1993 = smul.u32 %s1992, 104
                %s1994 = smul.u32 %s1992, 104
                %s1995 = scalar_lea.vmem %s1933, %s1993 [#allocation6]
                %s1996 = scalar_lea.vmem %s1944, %s1994
              $region69: #{tpu_custom_call.1} parent=63 // loop_footer
                %s1958 = sadd.s32 %s1956, 1
              $region70: #{tpu_custom_call.1} parent=63 // loop_footer_branch
                %1955 = sbr.rel target = $region66
              $region71: #{tpu_custom_call.1} parent=63 // loop_exit
                _
              %s1997 = sdiv.u32.pop %s1940, 13
              %s1998 = srem.u32.pop %s1940, 13
              %s1999 = smul.u32 %s1997, 13
              %s2000 = smul.u32 8, %s1999
              %s2001 = scalar_lea.vmem %s1933, %s2000 [#allocation6]
              %s2002 = smul.u32 8, %s1999
              %s2003 = scalar_lea.vmem %s1944, %s2002
              // While loop
              $region72: #{tpu_custom_call.1} parent=63 // loop_pre_header
                _
              $region73: #{tpu_custom_call.1} parent=63 // loop_header
                %s2005 = sphi 0, %s2007
                %p2006 = scmp.ge.s32.totalorder %s2005, %s1998
                %s2010 = sphi 0, %s2017
                %s2011 = sphi %s2001, %s2020
                %s2012 = sphi %s2003, %s2021
              $region74: #{tpu_custom_call.1} parent=63 // loop_header_branch
                %2009 = sbr.rel (%p2006) target = $region78
              $region75: #{tpu_custom_call.1} parent=63 // loop_body
                %v2013 = vld [vmem:[%s2011] sm:$0xff]
                %2014 = vst [vmem:[%s2012] sm:$0xff] %v2013
                %s2015 = sadd.s32 1, %s2010
                %p2016 = scmp.ge.s32.totalorder %s2015, %s1998
                %s2017 = scalar_select %p2016, 0, %s2015
                %s2018 = smul.u32 %s2017, 8
                %s2019 = smul.u32 %s2017, 8
                %s2020 = scalar_lea.vmem %s2001, %s2018 [#allocation6]
                %s2021 = scalar_lea.vmem %s2003, %s2019
              $region76: #{tpu_custom_call.1} parent=63 // loop_footer
                %s2007 = sadd.s32 %s2005, 1
              $region77: #{tpu_custom_call.1} parent=63 // loop_footer_branch
                %2004 = sbr.rel target = $region73
              $region78: #{tpu_custom_call.1} parent=63 // loop_exit
                _
            $region64: #{tpu_custom_call.1} parent=55 // pred_fallthru
              _
          $region56: #{tpu_custom_call.1} parent=51 // pred_fallthru
            _
          %2095 = vnop
        $region52: #{tpu_custom_call.1} parent=39 // pred_fallthru
          _
      $region40: #{tpu_custom_call.1} parent=5 // pred_fallthru
        _
      %p2096 = scmp.le.s32.totalorder 2, %s15
      // Predicated region
      $region101: #{tpu_custom_call.1} parent=5 // pred_check
        %p2097 = pneg %p2096
      $region102: #{tpu_custom_call.1} parent=5 // pred_check_branch
        %2099 = sbr.rel (%p2097) target = $region104
      $region103: #{tpu_custom_call.1} parent=5 // pred_region
        %s2100 = ssub.s32 %s15, 2
        // Predicated region
        $region105: #{tpu_custom_call.1} parent=103 // pred_check
          %p2101 = pneg %p154
        $region106: #{tpu_custom_call.1} parent=103 // pred_check_branch
          %2103 = sbr.rel (%p2101) target = $region108
        $region107: #{tpu_custom_call.1} parent=103 // pred_region
          %s2104 = sand.u32 %s139, 1
          %s2105 = sand.u32 %s139, 1
          %s2106 = smul.addr %s2105, 104
          %s2107 = scalar_lea.vmem [#allocation6], %s2106
        $region108: #{tpu_custom_call.1} parent=103 // pred_fallthru
          _
      $region104: #{tpu_custom_call.1} parent=5 // pred_fallthru
        _
    $region6: #{tpu_custom_call.1} parent=1 // loop_footer
      %s19 = sadd.s32 1, %s15
    $region7: #{tpu_custom_call.1} parent=1 // loop_footer_branch
      %14 = sbr.rel target = $region3
    $region8: #{tpu_custom_call.1} parent=1 // loop_exit
      _
    %2108 = vsyncpa [#allocation3], 1
    %s2109 = scalar_lea.sflag [#allocation3], 1
    %2110 = vsyncpa %s2109, 1
    %2111 = vsyncpa [#allocation5], 1

</llo_original>
